<compile_context>
chip_gen: v7x
topology: tpu7x:2x2x1
jax: 0.10.0
libtpu: 0.0.40
codegen_flags: <defaults>
</compile_context>

<pallas_src>
import functools

import jax
import jax.numpy as jnp
import numpy as np
from jax.experimental import pallas as pl
from jax.experimental.pallas import tpu as pltpu


# ---------------------------------------------------------------------------
# Fused Pallas kernels
# ---------------------------------------------------------------------------
def _depthwise_from_scratch(xp_ref, wdw_ref, bdw_ref, ho, wo, c, *, ksize, stride):
    """k x k depthwise conv over the zero-padded VMEM scratch (+ folded-BN bias)."""
    wtaps = wdw_ref[...]  # (k*k, 1, c) — loaded once, indexed per tap
    acc = jnp.zeros((ho, wo, c), jnp.float32)
    for kh in range(ksize):
        for kw in range(ksize):
            if stride == 1:
                patch = xp_ref[kh:kh + ho, kw:kw + wo, :]
            else:
                # Stride handled directly via strided reads (no overcompute).
                patch = xp_ref[pl.ds(kh, ho, stride=stride),
                               pl.ds(kw, wo, stride=stride), :]
            acc = acc + patch * wtaps[kh * ksize + kw]  # tap weight: (1, c)
    return acc + bdw_ref[...]


def _fused_main_kernel(x_ref, w1_ref, b1_ref, wdw_ref, bdw_ref, w3_ref, b3_ref,
                       o_ref, xp_ref, *, ksize, stride, pad):
    """pw1(+BN+ReLU) -> depthwise kxk(+BN) -> pw2(+BN+ReLU), all in VMEM."""
    _, h, w, cin = x_ref.shape
    cmid = w1_ref.shape[1]
    cout = w3_ref.shape[1]
    _, ho, wo, _ = o_ref.shape

    # Zero the padded scratch (only the halo ring really needs it; wholesale
    # zeroing is a trivially cheap, alignment-friendly VMEM memset).
    xp_ref[...] = jnp.zeros(xp_ref.shape, xp_ref.dtype)

    # ---- 1x1 conv (BN scale pre-folded into w1) + bias + ReLU ----
    y1 = jnp.dot(x_ref[0].reshape(h * w, cin), w1_ref[...],
                 preferred_element_type=jnp.float32)
    y1 = jnp.maximum(y1 + b1_ref[...], 0.0)
    xp_ref[pad:pad + h, pad:pad + w, :] = y1.reshape(h, w, cmid)

    # ---- k x k depthwise conv (stride 1 or 2) + folded-BN bias ----
    y2 = _depthwise_from_scratch(xp_ref, wdw_ref, bdw_ref, ho, wo, cmid,
                                 ksize=ksize, stride=stride)

    # ---- 1x1 conv (BN scale pre-folded into w3) + bias + ReLU ----
    y3 = jnp.dot(y2.reshape(ho * wo, cmid), w3_ref[...],
                 preferred_element_type=jnp.float32)
    y3 = jnp.maximum(y3 + b3_ref[...], 0.0)
    o_ref[0] = y3.reshape(ho, wo, cout).astype(o_ref.dtype)


def _fused_proj_kernel(x_ref, wdw_ref, bdw_ref, w_ref, b_ref,
                       o_ref, xp_ref, *, ksize, stride, pad):
    """Projection branch: depthwise kxk stride-2 (+BN) -> 1x1 conv (+BN+ReLU)."""
    _, h, w, cin = x_ref.shape
    cout = w_ref.shape[1]
    _, ho, wo, _ = o_ref.shape

    xp_ref[...] = jnp.zeros(xp_ref.shape, xp_ref.dtype)
    xp_ref[pad:pad + h, pad:pad + w, :] = x_ref[0].astype(xp_ref.dtype)

    y = _depthwise_from_scratch(xp_ref, wdw_ref, bdw_ref, ho, wo, cin,
                                ksize=ksize, stride=stride)

    y2 = jnp.dot(y.reshape(ho * wo, cin), w_ref[...],
                 preferred_element_type=jnp.float32)
    y2 = jnp.maximum(y2 + b_ref[...], 0.0)
    o_ref[0] = y2.reshape(ho, wo, cout).astype(o_ref.dtype)


# ---------------------------------------------------------------------------
# pallas_call wrappers
# ---------------------------------------------------------------------------
_COMPILER_PARAMS = pltpu.CompilerParams(
    dimension_semantics=("parallel",),          # batch dim is independent
    vmem_limit_bytes=32 * 1024 * 1024,          # safe on v5e/v6e/v7x
)


def _conv_out_hw(h, w, ksize, stride, pad):
    return (h + 2 * pad - ksize) // stride + 1, (w + 2 * pad - ksize) // stride + 1


def fused_main_branch(x_nhwc, w1, b1, wdw, bdw, w3, b3, *, ksize, stride):
    """x: (N,H,W,Cin) f32; w1:(Cin,Cmid); wdw:(k,k,Cmid); w3:(Cmid,Cout)."""
    n, h, w, cin = x_nhwc.shape
    cmid = w1.shape[1]
    cout = w3.shape[1]
    pad = ksize // 2
    ho, wo = _conv_out_hw(h, w, ksize, stride, pad)

    kernel = functools.partial(_fused_main_kernel, ksize=ksize, stride=stride, pad=pad)
    return pl.pallas_call(
        kernel,
        out_shape=jax.ShapeDtypeStruct((n, ho, wo, cout), x_nhwc.dtype),
        grid_spec=pltpu.PrefetchScalarGridSpec(
            num_scalar_prefetch=0,
            grid=(n,),
            in_specs=[
                pl.BlockSpec((1, h, w, cin), lambda i: (i, 0, 0, 0)),
                pl.BlockSpec((cin, cmid), lambda i: (0, 0)),
                pl.BlockSpec((1, cmid), lambda i: (0, 0)),
                pl.BlockSpec((ksize * ksize, 1, cmid), lambda i: (0, 0, 0)),
                pl.BlockSpec((1, cmid), lambda i: (0, 0)),
                pl.BlockSpec((cmid, cout), lambda i: (0, 0)),
                pl.BlockSpec((1, cout), lambda i: (0, 0)),
            ],
            out_specs=pl.BlockSpec((1, ho, wo, cout), lambda i: (i, 0, 0, 0)),
            scratch_shapes=[pltpu.VMEM((h + 2 * pad, w + 2 * pad, cmid), jnp.float32)],
        ),
        compiler_params=_COMPILER_PARAMS,
    )(x_nhwc, w1, b1.reshape(1, cmid),
      wdw.reshape(ksize * ksize, 1, cmid), bdw.reshape(1, cmid),
      w3, b3.reshape(1, cout))


def fused_proj_branch(x_nhwc, wdw, bdw, wpw, bpw, *, ksize, stride):
    """x: (N,H,W,Cin); wdw:(k,k,Cin); wpw:(Cin,Cout)."""
    n, h, w, cin = x_nhwc.shape
    cout = wpw.shape[1]
    pad = ksize // 2
    ho, wo = _conv_out_hw(h, w, ksize, stride, pad)

    kernel = functools.partial(_fused_proj_kernel, ksize=ksize, stride=stride, pad=pad)
    return pl.pallas_call(
        kernel,
        out_shape=jax.ShapeDtypeStruct((n, ho, wo, cout), x_nhwc.dtype),
        grid_spec=pltpu.PrefetchScalarGridSpec(
            num_scalar_prefetch=0,
            grid=(n,),
            in_specs=[
                pl.BlockSpec((1, h, w, cin), lambda i: (i, 0, 0, 0)),
                pl.BlockSpec((ksize * ksize, 1, cin), lambda i: (0, 0, 0)),
                pl.BlockSpec((1, cin), lambda i: (0, 0)),
                pl.BlockSpec((cin, cout), lambda i: (0, 0)),
                pl.BlockSpec((1, cout), lambda i: (0, 0)),
            ],
            out_specs=pl.BlockSpec((1, ho, wo, cout), lambda i: (i, 0, 0, 0)),
            scratch_shapes=[pltpu.VMEM((h + 2 * pad, w + 2 * pad, cin), jnp.float32)],
        ),
        compiler_params=_COMPILER_PARAMS,
    )(x_nhwc, wdw.reshape(ksize * ksize, 1, cin), bdw.reshape(1, cin),
      wpw, bpw.reshape(1, cout))


# ---------------------------------------------------------------------------
# ShuffleV2Block forward (NCHW in / NCHW out, matching the PyTorch module)
# ---------------------------------------------------------------------------
@functools.partial(jax.jit, static_argnames=("inp", "oup", "mid_channels", "ksize", "stride"))
def shuffle_v2_block(params, old_x, *, inp, oup, mid_channels, ksize, stride):
    assert stride in (1, 2)
    xn = jnp.transpose(old_x, (0, 2, 3, 1))  # single boundary transpose to NHWC

    # Eval-mode BN: fold the scale into the conv weights; kernels add only bias.
    w1 = params["w1"] * params["s1"][None, :]
    wdw = params["wdw"] * params["sdw"][None, None, :]
    w3 = params["w3"] * params["s3"][None, :]

    if stride == 1:
        assert xn.shape[-1] % 4 == 0
        # Channel shuffle: even channels pass through, odd channels feed the
        # main branch (equivalent to PyTorch's reshape/permute shuffle).
        x_proj = xn[..., 0::2]
        x_main = xn[..., 1::2]
    else:
        x_proj = None
        x_main = xn

    main = fused_main_branch(x_main, w1, params["b1"], wdw, params["bdw"],
                             w3, params["b3"], ksize=ksize, stride=stride)

    if stride == 1:
        out = jnp.concatenate([x_proj, main], axis=-1)
    else:
        wpdw = params["wpdw"] * params["spdw"][None, None, :]
        wppw = params["wppw"] * params["sppw"][None, :]
        proj = fused_proj_branch(xn, wpdw, params["bpdw"], wppw, params["bppw"],
                                 ksize=ksize, stride=stride)
        out = jnp.concatenate([proj, main], axis=-1)
    return jnp.transpose(out, (0, 3, 1, 2))  # back to NCHW at the boundary


# ---------------------------------------------------------------------------
# Deterministic parameter init (eval-mode BN as per-channel scale/bias)
# ---------------------------------------------------------------------------
def init_params(key, *, inp, oup, mid_channels, ksize, stride):
    outputs = oup - inp
    ks = jax.random.split(key, 10)

    def bn(k, c):
        k1, k2 = jax.random.split(k)
        scale = jax.random.uniform(k1, (c,), jnp.float32, 0.5, 1.5)
        bias = 0.1 * jax.random.normal(k2, (c,), jnp.float32)
        return scale, bias

    p = {}
    p["w1"] = 0.5 * jax.random.normal(ks[0], (inp, mid_channels), jnp.float32)
    p["s1"], p["b1"] = bn(ks[1], mid_channels)
    p["wdw"] = 0.5 * jax.random.normal(ks[2], (ksize, ksize, mid_channels), jnp.float32)
    p["sdw"], p["bdw"] = bn(ks[3], mid_channels)
    p["w3"] = 0.5 * jax.random.normal(ks[4], (mid_channels, outputs), jnp.float32)
    p["s3"], p["b3"] = bn(ks[5], outputs)
    if stride == 2:
        p["wpdw"] = 0.5 * jax.random.normal(ks[6], (ksize, ksize, inp), jnp.float32)
        p["spdw"], p["bpdw"] = bn(ks[7], inp)
        p["wppw"] = 0.5 * jax.random.normal(ks[8], (inp, inp), jnp.float32)
        p["sppw"], p["bppw"] = bn(ks[9], inp)
    return p


# ---------------------------------------------------------------------------
# Pure-JAX reference (lax conv, PyTorch-faithful channel shuffle)
# ---------------------------------------------------------------------------
def _ref_channel_shuffle(x):  # NCHW; mirrors the PyTorch reshape/permute shuffle
    n, c, h, w = x.shape
    assert c % 4 == 0
    x = x.reshape(n * c // 2, 2, h * w)
    x = jnp.transpose(x, (1, 0, 2))
    x = x.reshape(2, n, c // 2, h, w)
    return x[0], x[1]


def _ref_pw(x, w, s, b, relu):
    wk = jnp.transpose(w, (1, 0))[:, :, None, None]  # OIHW
    y = jax.lax.conv_general_dilated(
        x, wk, (1, 1), "VALID",
        dimension_numbers=("NCHW", "OIHW", "NCHW"),
        precision=jax.lax.Precision.HIGHEST)
    y = y * s[None, :, None, None] + b[None, :, None, None]
    return jnp.maximum(y, 0.0) if relu else y


def _ref_dw(x, w, s, b, stride, pad):
    c = x.shape[1]
    wk = jnp.transpose(w, (2, 0, 1))[:, None, :, :]  # (C,1,k,k), groups=C
    y = jax.lax.conv_general_dilated(
        x, wk, (stride, stride), [(pad, pad), (pad, pad)],
        dimension_numbers=("NCHW", "OIHW", "NCHW"),
        feature_group_count=c,
        precision=jax.lax.Precision.HIGHEST)
    return y * s[None, :, None, None] + b[None, :, None, None]


def reference_block(params, old_x, *, inp, oup, mid_channels, ksize, stride):
    pad = ksize // 2

    def branch_main(x):
        y = _ref_pw(x, params["w1"], params["s1"], params["b1"], True)
        y = _ref_dw(y, params["wdw"], params["sdw"], params["bdw"], stride, pad)
        return _ref_pw(y, params["w3"], params["s3"], params["b3"], True)

    if stride == 1:
        x_proj, x = _ref_channel_shuffle(old_x)
        return jnp.concatenate([x_proj, branch_main(x)], axis=1)
    proj = _ref_dw(old_x, params["wpdw"], params["spdw"], params["bpdw"], stride, pad)
    proj = _ref_pw(proj, params["wppw"], params["sppw"], params["bppw"], True)
    return jnp.concatenate([proj, branch_main(old_x)], axis=1)


# ---------------------------------------------------------------------------
if __name__ == "__main__":
    key = jax.random.PRNGKey(0)
    kx, kp1, kp2 = jax.random.split(key, 3)

    # stride = 1 block: input has 2*inp channels (channel shuffle splits it).
    inp, oup, mid, ksize = 4, 8, 8, 3
    x = jax.random.normal(kx, (2, 2 * inp, 16, 16), jnp.float32)
    p1 = init_params(kp1, inp=inp, oup=oup, mid_channels=mid, ksize=ksize, stride=1)
    out1 = shuffle_v2_block(p1, x, inp=inp, oup=oup, mid_channels=mid, ksize=ksize, stride=1)
    out1 = jax.block_until_ready(out1)
    ref1 = reference_block(p1, x, inp=inp, oup=oup, mid_channels=mid, ksize=ksize, stride=1)
    assert out1.shape == (2, oup, 16, 16), out1.shape
    np.testing.assert_allclose(np.asarray(out1), np.asarray(ref1), rtol=3e-2, atol=3e-2)

    # stride = 2 block: input has inp channels, spatial is halved.
    inp2, oup2, mid2 = 8, 16, 8
    x2 = jax.random.normal(kx, (2, inp2, 16, 16), jnp.float32)
    p2 = init_params(kp2, inp=inp2, oup=oup2, mid_channels=mid2, ksize=ksize, stride=2)
    out2 = shuffle_v2_block(p2, x2, inp=inp2, oup=oup2, mid_channels=mid2, ksize=ksize, stride=2)
    out2 = jax.block_until_ready(out2)
    ref2 = reference_block(p2, x2, inp=inp2, oup=oup2, mid_channels=mid2, ksize=ksize, stride=2)
    assert out2.shape == (2, oup2, 8, 8), out2.shape
    np.testing.assert_allclose(np.asarray(out2), np.asarray(ref2), rtol=3e-2, atol=3e-2)

    print("KERNEL_OK")
</pallas_src>

<mosaic_0001>
module attributes {stable_mosaic.version = 11 : i64} {
  func.func @_fused_main_kernel(%arg0: i32, %arg1: memref<1x16x16x4xf32, #tpu.memory_space<vmem>>, %arg2: memref<4x8xf32, #tpu.memory_space<vmem>>, %arg3: memref<1x8xf32, #tpu.memory_space<vmem>>, %arg4: memref<9x1x8xf32, #tpu.memory_space<vmem>>, %arg5: memref<1x8xf32, #tpu.memory_space<vmem>>, %arg6: memref<8x4xf32, #tpu.memory_space<vmem>>, %arg7: memref<1x4xf32, #tpu.memory_space<vmem>>, %arg8: memref<1x16x16x4xf32, #tpu.memory_space<vmem>>, %arg9: memref<18x18x8xf32, #tpu.memory_space<vmem>>) attributes {dimension_semantics = [#tpu.dimension_semantics<parallel>], iteration_bounds = array<i64: 2>, scalar_prefetch = 0 : i64, scratch_operands = 1 : i64, tpu.core_type = #tpu.core_type<tc>, window_params = [{transform_indices = @transform_0, window_bounds = array<i64: 1, 16, 16, 4>}, {pipeline_mode = #tpu.pipeline_mode<synchronous>, transform_indices = @transform_1, window_bounds = array<i64: 4, 8>}, {pipeline_mode = #tpu.pipeline_mode<synchronous>, transform_indices = @transform_2, window_bounds = array<i64: 1, 8>}, {pipeline_mode = #tpu.pipeline_mode<synchronous>, transform_indices = @transform_3, window_bounds = array<i64: 9, 1, 8>}, {pipeline_mode = #tpu.pipeline_mode<synchronous>, transform_indices = @transform_4, window_bounds = array<i64: 1, 8>}, {pipeline_mode = #tpu.pipeline_mode<synchronous>, transform_indices = @transform_5, window_bounds = array<i64: 8, 4>}, {pipeline_mode = #tpu.pipeline_mode<synchronous>, transform_indices = @transform_6, window_bounds = array<i64: 1, 4>}, {transform_indices = @transform_7, window_bounds = array<i64: 1, 16, 16, 4>}]} {
    %cst = arith.constant 0.000000e+00 : f32
    %0 = vector.broadcast %cst : f32 to vector<18x18x8xf32>
    %c0 = arith.constant 0 : index
    %c0_0 = arith.constant 0 : index
    %c0_1 = arith.constant 0 : index
    %1 = vector.load %arg9[%c0, %c0_0, %c0_1] : memref<18x18x8xf32, #tpu.memory_space<vmem>>, vector<18x18x8xf32>
    tpu.vector_store %arg9[%c0, %c0_0, %c0_1], %0 {strides = array<i32>} : memref<18x18x8xf32, #tpu.memory_space<vmem>>, vector<18x18x8xf32>,
    %c0_2 = arith.constant 0 : index
    %c0_3 = arith.constant 0 : index
    %c0_4 = arith.constant 0 : index
    %c0_5 = arith.constant 0 : index
    %2 = vector.load %arg1[%c0_2, %c0_3, %c0_4, %c0_5] : memref<1x16x16x4xf32, #tpu.memory_space<vmem>>, vector<1x16x16x4xf32>
    %3 = vector.shape_cast %2 : vector<1x16x16x4xf32> to vector<16x16x4xf32>
    %4 = vector.shape_cast %3 : vector<16x16x4xf32> to vector<256x4xf32>
    %c0_6 = arith.constant 0 : index
    %c0_7 = arith.constant 0 : index
    %5 = vector.load %arg2[%c0_6, %c0_7] : memref<4x8xf32, #tpu.memory_space<vmem>>, vector<4x8xf32>
    %cst_8 = arith.constant dense<0.000000e+00> : vector<256x8xf32>
    %6 = tpu.matmul %4, %5, %cst_8 {dimension_numbers = #tpu.dot_dimension_numbers<[1], [0], [0], [1], [0, 0, 1, 1], [], []>} : vector<256x4xf32>, vector<4x8xf32>, vector<256x8xf32> -> vector<256x8xf32>
    %c0_9 = arith.constant 0 : index
    %c0_10 = arith.constant 0 : index
    %7 = vector.load %arg3[%c0_9, %c0_10] : memref<1x8xf32, #tpu.memory_space<vmem>>, vector<1x8xf32>
    %8 = vector.broadcast %7 : vector<1x8xf32> to vector<256x8xf32>
    %9 = arith.addf %6, %8 : vector<256x8xf32>
    %cst_11 = arith.constant 0.000000e+00 : f32
    %10 = vector.broadcast %cst_11 : f32 to vector<256x8xf32>
    %11 = arith.maximumf %9, %10 : vector<256x8xf32>
    %12 = vector.shape_cast %11 : vector<256x8xf32> to vector<16x16x8xf32>
    %c1 = arith.constant 1 : index
    %c1_12 = arith.constant 1 : index
    %c0_13 = arith.constant 0 : index
    %13 = vector.load %arg9[%c1, %c1_12, %c0_13] : memref<18x18x8xf32, #tpu.memory_space<vmem>>, vector<16x16x8xf32>
    tpu.vector_store %arg9[%c1, %c1_12, %c0_13], %12 {strides = array<i32>} : memref<18x18x8xf32, #tpu.memory_space<vmem>>, vector<16x16x8xf32>,
    %c0_14 = arith.constant 0 : index
    %c0_15 = arith.constant 0 : index
    %c0_16 = arith.constant 0 : index
    %14 = vector.load %arg4[%c0_14, %c0_15, %c0_16] : memref<9x1x8xf32, #tpu.memory_space<vmem>>, vector<9x1x8xf32>
    %cst_17 = arith.constant 0.000000e+00 : f32
    %15 = vector.broadcast %cst_17 : f32 to vector<16x16x8xf32>
    %c0_18 = arith.constant 0 : index
    %c0_19 = arith.constant 0 : index
    %c0_20 = arith.constant 0 : index
    %16 = vector.load %arg9[%c0_18, %c0_19, %c0_20] : memref<18x18x8xf32, #tpu.memory_space<vmem>>, vector<16x16x8xf32>
    %17 = vector.extract_strided_slice %14 {offsets = [0, 0, 0], sizes = [1, 1, 8], strides = [1, 1, 1]} : vector<9x1x8xf32> to vector<1x1x8xf32>
    %18 = vector.shape_cast %17 : vector<1x1x8xf32> to vector<1x8xf32>
    %19 = vector.shape_cast %18 : vector<1x8xf32> to vector<1x1x8xf32>
    %20 = vector.broadcast %19 : vector<1x1x8xf32> to vector<16x16x8xf32>
    %21 = arith.mulf %16, %20 : vector<16x16x8xf32>
    %22 = arith.addf %15, %21 : vector<16x16x8xf32>
    %c0_21 = arith.constant 0 : index
    %c1_22 = arith.constant 1 : index
    %c0_23 = arith.constant 0 : index
    %23 = vector.load %arg9[%c0_21, %c1_22, %c0_23] : memref<18x18x8xf32, #tpu.memory_space<vmem>>, vector<16x16x8xf32>
    %24 = vector.extract_strided_slice %14 {offsets = [1, 0, 0], sizes = [1, 1, 8], strides = [1, 1, 1]} : vector<9x1x8xf32> to vector<1x1x8xf32>
    %25 = vector.shape_cast %24 : vector<1x1x8xf32> to vector<1x8xf32>
    %26 = vector.shape_cast %25 : vector<1x8xf32> to vector<1x1x8xf32>
    %27 = vector.broadcast %26 : vector<1x1x8xf32> to vector<16x16x8xf32>
    %28 = arith.mulf %23, %27 : vector<16x16x8xf32>
    %29 = arith.addf %22, %28 : vector<16x16x8xf32>
    %c0_24 = arith.constant 0 : index
    %c2 = arith.constant 2 : index
    %c0_25 = arith.constant 0 : index
    %30 = vector.load %arg9[%c0_24, %c2, %c0_25] : memref<18x18x8xf32, #tpu.memory_space<vmem>>, vector<16x16x8xf32>
    %31 = vector.extract_strided_slice %14 {offsets = [2, 0, 0], sizes = [1, 1, 8], strides = [1, 1, 1]} : vector<9x1x8xf32> to vector<1x1x8xf32>
    %32 = vector.shape_cast %31 : vector<1x1x8xf32> to vector<1x8xf32>
    %33 = vector.shape_cast %32 : vector<1x8xf32> to vector<1x1x8xf32>
    %34 = vector.broadcast %33 : vector<1x1x8xf32> to vector<16x16x8xf32>
    %35 = arith.mulf %30, %34 : vector<16x16x8xf32>
    %36 = arith.addf %29, %35 : vector<16x16x8xf32>
    %c1_26 = arith.constant 1 : index
    %c0_27 = arith.constant 0 : index
    %c0_28 = arith.constant 0 : index
    %37 = vector.load %arg9[%c1_26, %c0_27, %c0_28] : memref<18x18x8xf32, #tpu.memory_space<vmem>>, vector<16x16x8xf32>
    %38 = vector.extract_strided_slice %14 {offsets = [3, 0, 0], sizes = [1, 1, 8], strides = [1, 1, 1]} : vector<9x1x8xf32> to vector<1x1x8xf32>
    %39 = vector.shape_cast %38 : vector<1x1x8xf32> to vector<1x8xf32>
    %40 = vector.shape_cast %39 : vector<1x8xf32> to vector<1x1x8xf32>
    %41 = vector.broadcast %40 : vector<1x1x8xf32> to vector<16x16x8xf32>
    %42 = arith.mulf %37, %41 : vector<16x16x8xf32>
    %43 = arith.addf %36, %42 : vector<16x16x8xf32>
    %c1_29 = arith.constant 1 : index
    %c1_30 = arith.constant 1 : index
    %c0_31 = arith.constant 0 : index
    %44 = vector.load %arg9[%c1_29, %c1_30, %c0_31] : memref<18x18x8xf32, #tpu.memory_space<vmem>>, vector<16x16x8xf32>
    %45 = vector.extract_strided_slice %14 {offsets = [4, 0, 0], sizes = [1, 1, 8], strides = [1, 1, 1]} : vector<9x1x8xf32> to vector<1x1x8xf32>
    %46 = vector.shape_cast %45 : vector<1x1x8xf32> to vector<1x8xf32>
    %47 = vector.shape_cast %46 : vector<1x8xf32> to vector<1x1x8xf32>
    %48 = vector.broadcast %47 : vector<1x1x8xf32> to vector<16x16x8xf32>
    %49 = arith.mulf %44, %48 : vector<16x16x8xf32>
    %50 = arith.addf %43, %49 : vector<16x16x8xf32>
    %c1_32 = arith.constant 1 : index
    %c2_33 = arith.constant 2 : index
    %c0_34 = arith.constant 0 : index
    %51 = vector.load %arg9[%c1_32, %c2_33, %c0_34] : memref<18x18x8xf32, #tpu.memory_space<vmem>>, vector<16x16x8xf32>
    %52 = vector.extract_strided_slice %14 {offsets = [5, 0, 0], sizes = [1, 1, 8], strides = [1, 1, 1]} : vector<9x1x8xf32> to vector<1x1x8xf32>
    %53 = vector.shape_cast %52 : vector<1x1x8xf32> to vector<1x8xf32>
    %54 = vector.shape_cast %53 : vector<1x8xf32> to vector<1x1x8xf32>
    %55 = vector.broadcast %54 : vector<1x1x8xf32> to vector<16x16x8xf32>
    %56 = arith.mulf %51, %55 : vector<16x16x8xf32>
    %57 = arith.addf %50, %56 : vector<16x16x8xf32>
    %c2_35 = arith.constant 2 : index
    %c0_36 = arith.constant 0 : index
    %c0_37 = arith.constant 0 : index
    %58 = vector.load %arg9[%c2_35, %c0_36, %c0_37] : memref<18x18x8xf32, #tpu.memory_space<vmem>>, vector<16x16x8xf32>
    %59 = vector.extract_strided_slice %14 {offsets = [6, 0, 0], sizes = [1, 1, 8], strides = [1, 1, 1]} : vector<9x1x8xf32> to vector<1x1x8xf32>
    %60 = vector.shape_cast %59 : vector<1x1x8xf32> to vector<1x8xf32>
    %61 = vector.shape_cast %60 : vector<1x8xf32> to vector<1x1x8xf32>
    %62 = vector.broadcast %61 : vector<1x1x8xf32> to vector<16x16x8xf32>
    %63 = arith.mulf %58, %62 : vector<16x16x8xf32>
    %64 = arith.addf %57, %63 : vector<16x16x8xf32>
    %c2_38 = arith.constant 2 : index
    %c1_39 = arith.constant 1 : index
    %c0_40 = arith.constant 0 : index
    %65 = vector.load %arg9[%c2_38, %c1_39, %c0_40] : memref<18x18x8xf32, #tpu.memory_space<vmem>>, vector<16x16x8xf32>
    %66 = vector.extract_strided_slice %14 {offsets = [7, 0, 0], sizes = [1, 1, 8], strides = [1, 1, 1]} : vector<9x1x8xf32> to vector<1x1x8xf32>
    %67 = vector.shape_cast %66 : vector<1x1x8xf32> to vector<1x8xf32>
    %68 = vector.shape_cast %67 : vector<1x8xf32> to vector<1x1x8xf32>
    %69 = vector.broadcast %68 : vector<1x1x8xf32> to vector<16x16x8xf32>
    %70 = arith.mulf %65, %69 : vector<16x16x8xf32>
    %71 = arith.addf %64, %70 : vector<16x16x8xf32>
    %c2_41 = arith.constant 2 : index
    %c2_42 = arith.constant 2 : index
    %c0_43 = arith.constant 0 : index
    %72 = vector.load %arg9[%c2_41, %c2_42, %c0_43] : memref<18x18x8xf32, #tpu.memory_space<vmem>>, vector<16x16x8xf32>
    %73 = vector.extract_strided_slice %14 {offsets = [8, 0, 0], sizes = [1, 1, 8], strides = [1, 1, 1]} : vector<9x1x8xf32> to vector<1x1x8xf32>
    %74 = vector.shape_cast %73 : vector<1x1x8xf32> to vector<1x8xf32>
    %75 = vector.shape_cast %74 : vector<1x8xf32> to vector<1x1x8xf32>
    %76 = vector.broadcast %75 : vector<1x1x8xf32> to vector<16x16x8xf32>
    %77 = arith.mulf %72, %76 : vector<16x16x8xf32>
    %78 = arith.addf %71, %77 : vector<16x16x8xf32>
    %c0_44 = arith.constant 0 : index
    %c0_45 = arith.constant 0 : index
    %79 = vector.load %arg5[%c0_44, %c0_45] : memref<1x8xf32, #tpu.memory_space<vmem>>, vector<1x8xf32>
    %80 = vector.shape_cast %79 : vector<1x8xf32> to vector<1x1x8xf32>
    %81 = vector.broadcast %80 : vector<1x1x8xf32> to vector<16x16x8xf32>
    %82 = arith.addf %78, %81 : vector<16x16x8xf32>
    %83 = vector.shape_cast %82 : vector<16x16x8xf32> to vector<256x8xf32>
    %c0_46 = arith.constant 0 : index
    %c0_47 = arith.constant 0 : index
    %84 = vector.load %arg6[%c0_46, %c0_47] : memref<8x4xf32, #tpu.memory_space<vmem>>, vector<8x4xf32>
    %cst_48 = arith.constant dense<0.000000e+00> : vector<256x4xf32>
    %85 = tpu.matmul %83, %84, %cst_48 {dimension_numbers = #tpu.dot_dimension_numbers<[1], [0], [0], [1], [0, 0, 1, 1], [], []>} : vector<256x8xf32>, vector<8x4xf32>, vector<256x4xf32> -> vector<256x4xf32>
    %c0_49 = arith.constant 0 : index
    %c0_50 = arith.constant 0 : index
    %86 = vector.load %arg7[%c0_49, %c0_50] : memref<1x4xf32, #tpu.memory_space<vmem>>, vector<1x4xf32>
    %87 = vector.broadcast %86 : vector<1x4xf32> to vector<256x4xf32>
    %88 = arith.addf %85, %87 : vector<256x4xf32>
    %cst_51 = arith.constant 0.000000e+00 : f32
    %89 = vector.broadcast %cst_51 : f32 to vector<256x4xf32>
    %90 = arith.maximumf %88, %89 : vector<256x4xf32>
    %91 = vector.shape_cast %90 : vector<256x4xf32> to vector<16x16x4xf32>
    %c0_52 = arith.constant 0 : index
    %c0_53 = arith.constant 0 : index
    %c0_54 = arith.constant 0 : index
    %c0_55 = arith.constant 0 : index
    %92 = vector.load %arg8[%c0_52, %c0_53, %c0_54, %c0_55] : memref<1x16x16x4xf32, #tpu.memory_space<vmem>>, vector<1x16x16x4xf32>
    %93 = vector.shape_cast %92 : vector<1x16x16x4xf32> to vector<16x16x4xf32>
    %94 = vector.shape_cast %91 : vector<16x16x4xf32> to vector<1x16x16x4xf32>
    tpu.vector_store %arg8[%c0_52, %c0_53, %c0_54, %c0_55], %94 {strides = array<i32>} : memref<1x16x16x4xf32, #tpu.memory_space<vmem>>, vector<1x16x16x4xf32>,
    return
  }
  func.func @transform_0(%arg0: i32) -> (i32, i32, i32, i32) {
    %c0_i32 = arith.constant 0 : i32
    %c0_i32_0 = arith.constant 0 : i32
    %c0_i32_1 = arith.constant 0 : i32
    %c0_i32_2 = arith.constant 0 : i32
    return %arg0, %c0_i32, %c0_i32_0, %c0_i32_1 : i32, i32, i32, i32
  }
  func.func @transform_1(%arg0: i32) -> (i32, i32) {
    %c0_i32 = arith.constant 0 : i32
    %c0_i32_0 = arith.constant 0 : i32
    %c0_i32_1 = arith.constant 0 : i32
    return %c0_i32, %c0_i32_0 : i32, i32
  }
  func.func @transform_2(%arg0: i32) -> (i32, i32) {
    %c0_i32 = arith.constant 0 : i32
    %c0_i32_0 = arith.constant 0 : i32
    %c0_i32_1 = arith.constant 0 : i32
    return %c0_i32, %c0_i32_0 : i32, i32
  }
  func.func @transform_3(%arg0: i32) -> (i32, i32, i32) {
    %c0_i32 = arith.constant 0 : i32
    %c0_i32_0 = arith.constant 0 : i32
    %c0_i32_1 = arith.constant 0 : i32
    %c0_i32_2 = arith.constant 0 : i32
    return %c0_i32, %c0_i32_0, %c0_i32_1 : i32, i32, i32
  }
  func.func @transform_4(%arg0: i32) -> (i32, i32) {
    %c0_i32 = arith.constant 0 : i32
    %c0_i32_0 = arith.constant 0 : i32
    %c0_i32_1 = arith.constant 0 : i32
    return %c0_i32, %c0_i32_0 : i32, i32
  }
  func.func @transform_5(%arg0: i32) -> (i32, i32) {
    %c0_i32 = arith.constant 0 : i32
    %c0_i32_0 = arith.constant 0 : i32
    %c0_i32_1 = arith.constant 0 : i32
    return %c0_i32, %c0_i32_0 : i32, i32
  }
  func.func @transform_6(%arg0: i32) -> (i32, i32) {
    %c0_i32 = arith.constant 0 : i32
    %c0_i32_0 = arith.constant 0 : i32
    %c0_i32_1 = arith.constant 0 : i32
    return %c0_i32, %c0_i32_0 : i32, i32
  }
  func.func @transform_7(%arg0: i32) -> (i32, i32, i32, i32) {
    %c0_i32 = arith.constant 0 : i32
    %c0_i32_0 = arith.constant 0 : i32
    %c0_i32_1 = arith.constant 0 : i32
    %c0_i32_2 = arith.constant 0 : i32
    return %arg0, %c0_i32, %c0_i32_0, %c0_i32_1 : i32, i32, i32, i32
  }
}

</mosaic_0001>

<llo_original>
// kernel: shuffle_v2_block.1
$region0: #{shuffle_v2_block.1}
  #allocation0 [shape = 'u32[]', space=smem, size = 0x4, offset = 0x4, fixed_abs, tag = 'smem constant byte address 0x4 - core index']
  #allocation1 [shape = 'u32[144,128]{1,0:T(1,128)}', space=vmem, size = 0x12000, scoped, tag = 'internal scratch']
  #allocation2 [shape = 'f32[18,18,8]{2,1,0:T(8,128)}', space=vmem, size = 0x36000, scoped, tag = 'scratch operand']
  %s0 = inlined_call_operand.vmem [shape: f32[2,16,16,4], index: 0, kind: input, shape index: {}]
  %s1 = inlined_call_operand.vmem [shape: f32[4,8], index: 1, kind: input, shape index: {}]
  %s2 = inlined_call_operand.vmem [shape: f32[1,8], index: 2, kind: input, shape index: {}]
  %s3 = inlined_call_operand.vmem [shape: f32[9,1,8], index: 3, kind: input, shape index: {}]
  %s4 = inlined_call_operand.vmem [shape: f32[1,8], index: 4, kind: input, shape index: {}]
  %s5 = inlined_call_operand.vmem [shape: f32[8,4], index: 5, kind: input, shape index: {}]
  %s6 = inlined_call_operand.vmem [shape: f32[1,4], index: 6, kind: input, shape index: {}]
  %s7 = inlined_call_operand.vmem [shape: f32[2,16,16,4], index: 7, kind: output, shape index: {}]
  %s8 = sld [smem:[#allocation0]]
  $region61: #{shuffle_v2_block.1} parent=0
    _
  %s10 = ssub.s32 1, %s8
  %s11 = scalar_select 0, %s10, %s8
  loop: start=0, step=1, limit=4
  $region2: #{shuffle_v2_block.1} parent=0 // loop_pre_header
    _
  $region3: #{shuffle_v2_block.1} parent=0 // loop_header
    %s13 = sphi 0, %s17
    %p14 = scmp.ge.s32.totalorder %s13, 4
    %s23 = sphi 0, %s25
    %s26 = sphi 0, %s23
    %s27 = sphi 0, %s26
    %s43 = sphi 0, %s27
    %s47 = sphi 0, %s47
    %s49 = sphi 0, %s47
    %s50 = sphi 0, %s49
    %s64 = sphi 0, %s50
    %s68 = sphi 0, %s68
    %s70 = sphi 0, %s68
    %s71 = sphi 0, %s70
    %s85 = sphi 0, %s71
    %s89 = sphi 0, %s89
    %s91 = sphi 0, %s89
    %s92 = sphi 0, %s91
    %s106 = sphi 0, %s92
    %s110 = sphi 0, %s110
    %s112 = sphi 0, %s110
    %s113 = sphi 0, %s112
    %s127 = sphi 0, %s113
    %s131 = sphi 0, %s131
    %s133 = sphi 0, %s131
    %s134 = sphi 0, %s133
    %s148 = sphi 0, %s134
    %s152 = sphi 0, %s152
    %s154 = sphi 0, %s152
    %s155 = sphi 0, %s154
    %s169 = sphi 0, %s155
    %s175 = sphi 0, %s177
    %s178 = sphi 0, %s175
    %s179 = sphi 0, %s178
    %s195 = sphi 0, %s179
  $region4: #{shuffle_v2_block.1} parent=0 // loop_header_branch
    %16 = sbr.rel (%p14) target = $region8
  $region5: #{shuffle_v2_block.1} parent=0 // loop_body
    %s18 = ssub.s32 %s13, 1
    %s19 = ssub.s32 %s13, 2
    %s20 = sadd.s32 %s13, 1
    %s21 = ssub.s32 %s13, %s20
    %p22 = scmp.eq.s32.totalorder %s21, 0
    %s24 = sadd.s32 %s23, 1
    %s25 = scalar_select %p22, %s23, %s24
    %p28 = pneg %p22
    %p29 = scmp.eq.s32.totalorder %s13, 1
    %p30 = por %p28, %p29
    %p31 = scmp.ne.s32.totalorder %s23, %s26
    %p32 = scmp.eq.s32.totalorder %s13, 0
    %p33 = por %p31, %p32
    %p34 = scmp.ne.s32.totalorder %s23, %s26
    %p35 = scmp.eq.s32.totalorder %s18, 1
    %p36 = por %p34, %p35
    %p37 = scmp.ne.s32.totalorder %s26, %s27
    %p38 = scmp.eq.s32.totalorder %s18, 0
    %p39 = por %p37, %p38
    %p40 = scmp.ne.s32.totalorder %s26, %s27
    %p41 = scmp.eq.s32.totalorder %s19, 1
    %p42 = por %p40, %p41
    %p44 = scmp.ne.s32.totalorder %s27, %s43
    %p45 = scmp.eq.s32.totalorder %s19, 0
    %p46 = por %p44, %p45
    %s48 = sadd.s32 %s47, 1
    %p51 = scmp.eq.s32.totalorder %s13, 1
    %p52 = scmp.ne.s32.totalorder %s47, %s49
    %p53 = scmp.eq.s32.totalorder %s13, 0
    %p54 = por %p52, %p53
    %p55 = scmp.ne.s32.totalorder %s47, %s49
    %p56 = scmp.eq.s32.totalorder %s18, 1
    %p57 = por %p55, %p56
    %p58 = scmp.ne.s32.totalorder %s49, %s50
    %p59 = scmp.eq.s32.totalorder %s18, 0
    %p60 = por %p58, %p59
    %p61 = scmp.ne.s32.totalorder %s49, %s50
    %p62 = scmp.eq.s32.totalorder %s19, 1
    %p63 = por %p61, %p62
    %p65 = scmp.ne.s32.totalorder %s50, %s64
    %p66 = scmp.eq.s32.totalorder %s19, 0
    %p67 = por %p65, %p66
    %s69 = sadd.s32 %s68, 1
    %p72 = scmp.eq.s32.totalorder %s13, 1
    %p73 = scmp.ne.s32.totalorder %s68, %s70
    %p74 = scmp.eq.s32.totalorder %s13, 0
    %p75 = por %p73, %p74
    %p76 = scmp.ne.s32.totalorder %s68, %s70
    %p77 = scmp.eq.s32.totalorder %s18, 1
    %p78 = por %p76, %p77
    %p79 = scmp.ne.s32.totalorder %s70, %s71
    %p80 = scmp.eq.s32.totalorder %s18, 0
    %p81 = por %p79, %p80
    %p82 = scmp.ne.s32.totalorder %s70, %s71
    %p83 = scmp.eq.s32.totalorder %s19, 1
    %p84 = por %p82, %p83
    %p86 = scmp.ne.s32.totalorder %s71, %s85
    %p87 = scmp.eq.s32.totalorder %s19, 0
    %p88 = por %p86, %p87
    %s90 = sadd.s32 %s89, 1
    %p93 = scmp.eq.s32.totalorder %s13, 1
    %p94 = scmp.ne.s32.totalorder %s89, %s91
    %p95 = scmp.eq.s32.totalorder %s13, 0
    %p96 = por %p94, %p95
    %p97 = scmp.ne.s32.totalorder %s89, %s91
    %p98 = scmp.eq.s32.totalorder %s18, 1
    %p99 = por %p97, %p98
    %p100 = scmp.ne.s32.totalorder %s91, %s92
    %p101 = scmp.eq.s32.totalorder %s18, 0
    %p102 = por %p100, %p101
    %p103 = scmp.ne.s32.totalorder %s91, %s92
    %p104 = scmp.eq.s32.totalorder %s19, 1
    %p105 = por %p103, %p104
    %p107 = scmp.ne.s32.totalorder %s92, %s106
    %p108 = scmp.eq.s32.totalorder %s19, 0
    %p109 = por %p107, %p108
    %s111 = sadd.s32 %s110, 1
    %p114 = scmp.eq.s32.totalorder %s13, 1
    %p115 = scmp.ne.s32.totalorder %s110, %s112
    %p116 = scmp.eq.s32.totalorder %s13, 0
    %p117 = por %p115, %p116
    %p118 = scmp.ne.s32.totalorder %s110, %s112
    %p119 = scmp.eq.s32.totalorder %s18, 1
    %p120 = por %p118, %p119
    %p121 = scmp.ne.s32.totalorder %s112, %s113
    %p122 = scmp.eq.s32.totalorder %s18, 0
    %p123 = por %p121, %p122
    %p124 = scmp.ne.s32.totalorder %s112, %s113
    %p125 = scmp.eq.s32.totalorder %s19, 1
    %p126 = por %p124, %p125
    %p128 = scmp.ne.s32.totalorder %s113, %s127
    %p129 = scmp.eq.s32.totalorder %s19, 0
    %p130 = por %p128, %p129
    %s132 = sadd.s32 %s131, 1
    %p135 = scmp.eq.s32.totalorder %s13, 1
    %p136 = scmp.ne.s32.totalorder %s131, %s133
    %p137 = scmp.eq.s32.totalorder %s13, 0
    %p138 = por %p136, %p137
    %p139 = scmp.ne.s32.totalorder %s131, %s133
    %p140 = scmp.eq.s32.totalorder %s18, 1
    %p141 = por %p139, %p140
    %p142 = scmp.ne.s32.totalorder %s133, %s134
    %p143 = scmp.eq.s32.totalorder %s18, 0
    %p144 = por %p142, %p143
    %p145 = scmp.ne.s32.totalorder %s133, %s134
    %p146 = scmp.eq.s32.totalorder %s19, 1
    %p147 = por %p145, %p146
    %p149 = scmp.ne.s32.totalorder %s134, %s148
    %p150 = scmp.eq.s32.totalorder %s19, 0
    %p151 = por %p149, %p150
    %s153 = sadd.s32 %s152, 1
    %p156 = scmp.eq.s32.totalorder %s13, 1
    %p157 = scmp.ne.s32.totalorder %s152, %s154
    %p158 = scmp.eq.s32.totalorder %s13, 0
    %p159 = por %p157, %p158
    %p160 = scmp.ne.s32.totalorder %s152, %s154
    %p161 = scmp.eq.s32.totalorder %s18, 1
    %p162 = por %p160, %p161
    %p163 = scmp.ne.s32.totalorder %s154, %s155
    %p164 = scmp.eq.s32.totalorder %s18, 0
    %p165 = por %p163, %p164
    %p166 = scmp.ne.s32.totalorder %s154, %s155
    %p167 = scmp.eq.s32.totalorder %s19, 1
    %p168 = por %p166, %p167
    %p170 = scmp.ne.s32.totalorder %s155, %s169
    %p171 = scmp.eq.s32.totalorder %s19, 0
    %p172 = por %p170, %p171
    %s173 = ssub.s32 %s13, %s20
    %p174 = scmp.eq.s32.totalorder %s173, 0
    %s176 = sadd.s32 %s175, 1
    %s177 = scalar_select %p174, %s175, %s176
    %p180 = pneg %p174
    %p181 = scmp.eq.s32.totalorder %s13, 1
    %p182 = por %p180, %p181
    %p183 = scmp.ne.s32.totalorder %s175, %s178
    %p184 = scmp.eq.s32.totalorder %s13, 0
    %p185 = por %p183, %p184
    %p186 = scmp.ne.s32.totalorder %s175, %s178
    %p187 = scmp.eq.s32.totalorder %s18, 1
    %p188 = por %p186, %p187
    %p189 = scmp.ne.s32.totalorder %s178, %s179
    %p190 = scmp.eq.s32.totalorder %s18, 0
    %p191 = por %p189, %p190
    %p192 = scmp.ne.s32.totalorder %s178, %s179
    %p193 = scmp.eq.s32.totalorder %s19, 1
    %p194 = por %p192, %p193
    %p196 = scmp.ne.s32.totalorder %s179, %s195
    %p197 = scmp.eq.s32.totalorder %s19, 0
    %p198 = por %p196, %p197
    %p199 = scmp.le.s32.totalorder 1, %s13
    %p200 = scmp.lt.s32.totalorder %s13, 3
    %p201 = pnand %p199, %p200
    %p202 = pneg %p201
    // Predicated region
    $region9: #{shuffle_v2_block.1} parent=5 // pred_check
      _
    $region10: #{shuffle_v2_block.1} parent=5 // pred_check_branch
      %204 = sbr.rel (%p201) target = $region12
    $region11: #{shuffle_v2_block.1} parent=5 // pred_region
      %s205 = ssub.s32 %s13, 1
      // Predicated region
      $region13: #{shuffle_v2_block.1} parent=11 // pred_check
        %p206 = pneg %p60
      $region14: #{shuffle_v2_block.1} parent=11 // pred_check_branch
        %208 = sbr.rel (%p206) target = $region16
      $region15: #{shuffle_v2_block.1} parent=11 // pred_region
        _
      $region16: #{shuffle_v2_block.1} parent=11 // pred_fallthru
        _
      // Predicated region
      $region17: #{shuffle_v2_block.1} parent=11 // pred_check
        %p209 = pneg %p81
      $region18: #{shuffle_v2_block.1} parent=11 // pred_check_branch
        %211 = sbr.rel (%p209) target = $region20
      $region19: #{shuffle_v2_block.1} parent=11 // pred_region
        _
      $region20: #{shuffle_v2_block.1} parent=11 // pred_fallthru
        _
      // Predicated region
      $region21: #{shuffle_v2_block.1} parent=11 // pred_check
        %p212 = pneg %p102
      $region22: #{shuffle_v2_block.1} parent=11 // pred_check_branch
        %214 = sbr.rel (%p212) target = $region24
      $region23: #{shuffle_v2_block.1} parent=11 // pred_region
        _
      $region24: #{shuffle_v2_block.1} parent=11 // pred_fallthru
        _
      // Predicated region
      $region25: #{shuffle_v2_block.1} parent=11 // pred_check
        %p215 = pneg %p123
      $region26: #{shuffle_v2_block.1} parent=11 // pred_check_branch
        %217 = sbr.rel (%p215) target = $region28
      $region27: #{shuffle_v2_block.1} parent=11 // pred_region
        _
      $region28: #{shuffle_v2_block.1} parent=11 // pred_fallthru
        _
      // Predicated region
      $region29: #{shuffle_v2_block.1} parent=11 // pred_check
        %p218 = pneg %p144
      $region30: #{shuffle_v2_block.1} parent=11 // pred_check_branch
        %220 = sbr.rel (%p218) target = $region32
      $region31: #{shuffle_v2_block.1} parent=11 // pred_region
        _
      $region32: #{shuffle_v2_block.1} parent=11 // pred_fallthru
        _
      // Predicated region
      $region33: #{shuffle_v2_block.1} parent=11 // pred_check
        %p221 = pneg %p165
      $region34: #{shuffle_v2_block.1} parent=11 // pred_check_branch
        %223 = sbr.rel (%p221) target = $region36
      $region35: #{shuffle_v2_block.1} parent=11 // pred_region
        _
      $region36: #{shuffle_v2_block.1} parent=11 // pred_fallthru
        _
    $region12: #{shuffle_v2_block.1} parent=5 // pred_fallthru
      _
    %p224 = scmp.lt.s32.totalorder %s13, 2
    // Predicated region
    $region37: #{shuffle_v2_block.1} parent=5 // pred_check
      %p225 = pneg %p224
    $region38: #{shuffle_v2_block.1} parent=5 // pred_check_branch
      %227 = sbr.rel (%p225) target = $region40
    $region39: #{shuffle_v2_block.1} parent=5 // pred_region
      // Predicated region
      $region41: #{shuffle_v2_block.1} parent=39 // pred_check
        %p228 = pneg %p33
      $region42: #{shuffle_v2_block.1} parent=39 // pred_check_branch
        %230 = sbr.rel (%p228) target = $region44
      $region43: #{shuffle_v2_block.1} parent=39 // pred_region
        %p231 = scmp.lt.s32.totalorder %s13, 1
        %s232 = scalar_select %p231, %s13, 1
        %s233 = smul.addr %s232, 32
        %s234 = smul.addr %s233, 8
        %s235 = scalar_lea.vmem %s0, %s234
      $region44: #{shuffle_v2_block.1} parent=39 // pred_fallthru
        _
    $region40: #{shuffle_v2_block.1} parent=5 // pred_fallthru
      _
    %p236 = scmp.le.s32.totalorder 1, %s13
    %p237 = scmp.lt.s32.totalorder %s13, 3
    %p238 = pnand %p236, %p237
    %p239 = pneg %p238
    // Predicated region
    $region45: #{shuffle_v2_block.1} parent=5 // pred_check
      _
    $region46: #{shuffle_v2_block.1} parent=5 // pred_check_branch
      %241 = sbr.rel (%p238) target = $region48
    $region47: #{shuffle_v2_block.1} parent=5 // pred_region
      %s242 = ssub.s32 %s13, 1
      %p243 = scmp.lt.s32.totalorder %s18, 1
      %s244 = scalar_select %p243, %s18, 1
      %s245 = smul.addr %s244, 32
      %s246 = smul.addr %s245, 8
      %s247 = scalar_lea.vmem %s0, %s246
      %p248 = pneg %p39
      %p249 = pneg %p36
      %p250 = pneg %p60
      %p251 = pneg %p57
      %p252 = pneg %p81
      %p253 = pneg %p78
      %p254 = pneg %p102
      %p255 = pneg %p99
      %p256 = pneg %p123
      %p257 = pneg %p120
      %p258 = pneg %p144
      %p259 = pneg %p141
      %p260 = pneg %p165
      %p261 = pneg %p162
      %p262 = pneg %p191
      %p263 = pneg %p188
      %p264 = scmp.lt.s32.totalorder %s18, 1
      %s265 = scalar_select %p264, %s18, 1
      %s266 = smul.addr %s265, 32
      %s267 = smul.addr %s266, 8
      %s268 = scalar_lea.vmem %s7, %s267
      %p269 = scmp.lt.s32.totalorder %s18, 1
      %s270 = scalar_select %p269, %s18, 1
      %s271 = smul.addr %s270, 32
      %s272 = smul.addr %s271, 8
      %s273 = scalar_lea.vmem %s0, %s272
      %p274 = scmp.lt.s32.totalorder %s18, 1
      %s275 = scalar_select %p274, %s18, 1
      %s276 = smul.addr %s275, 32
      %s277 = smul.addr %s276, 8
      %s278 = scalar_lea.vmem %s7, %s277
      %vm279 = vcmask 64512
      %280 = vst.msk [vmem:[#allocation2] sm:$0xff] %vm279, 0.0
      %281 = vst.msk [vmem:[#allocation2 + $0x8] sm:$0xff] %vm279, 0.0
      %vm282 = vcmask 58368
      %283 = vst.msk [vmem:[#allocation2 + $0x10] sm:$0x3] %vm282, 0.0
      %284 = vst.msk [vmem:[#allocation2 + $0x18] sm:$0xff] %vm279, 0.0
      %285 = vst.msk [vmem:[#allocation2 + $0x20] sm:$0xff] %vm279, 0.0
      %286 = vst.msk [vmem:[#allocation2 + $0x28] sm:$0x3] %vm282, 0.0
      %287 = vst.msk [vmem:[#allocation2 + $0x30] sm:$0xff] %vm279, 0.0
      %288 = vst.msk [vmem:[#allocation2 + $0x38] sm:$0xff] %vm279, 0.0
      %289 = vst.msk [vmem:[#allocation2 + $0x40] sm:$0x3] %vm282, 0.0
      %290 = vst.msk [vmem:[#allocation2 + $0x48] sm:$0xff] %vm279, 0.0
      %291 = vst.msk [vmem:[#allocation2 + $0x50] sm:$0xff] %vm279, 0.0
      %292 = vst.msk [vmem:[#allocation2 + $0x58] sm:$0x3] %vm282, 0.0
      %293 = vst.msk [vmem:[#allocation2 + $0x60] sm:$0xff] %vm279, 0.0
      %294 = vst.msk [vmem:[#allocation2 + $0x68] sm:$0xff] %vm279, 0.0
      %295 = vst.msk [vmem:[#allocation2 + $0x70] sm:$0x3] %vm282, 0.0
      %296 = vst.msk [vmem:[#allocation2 + $0x78] sm:$0xff] %vm279, 0.0
      %297 = vst.msk [vmem:[#allocation2 + $0x80] sm:$0xff] %vm279, 0.0
      %298 = vst.msk [vmem:[#allocation2 + $0x88] sm:$0x3] %vm282, 0.0
      %299 = vst.msk [vmem:[#allocation2 + $0x90] sm:$0xff] %vm279, 0.0
      %300 = vst.msk [vmem:[#allocation2 + $0x98] sm:$0xff] %vm279, 0.0
      %301 = vst.msk [vmem:[#allocation2 + $0xa0] sm:$0x3] %vm282, 0.0
      %302 = vst.msk [vmem:[#allocation2 + $0xa8] sm:$0xff] %vm279, 0.0
      %303 = vst.msk [vmem:[#allocation2 + $0xb0] sm:$0xff] %vm279, 0.0
      %304 = vst.msk [vmem:[#allocation2 + $0xb8] sm:$0x3] %vm282, 0.0
      %305 = vst.msk [vmem:[#allocation2 + $0xc0] sm:$0xff] %vm279, 0.0
      %306 = vst.msk [vmem:[#allocation2 + $0xc8] sm:$0xff] %vm279, 0.0
      %307 = vst.msk [vmem:[#allocation2 + $0xd0] sm:$0x3] %vm282, 0.0
      %308 = vst.msk [vmem:[#allocation2 + $0xd8] sm:$0xff] %vm279, 0.0
      %309 = vst.msk [vmem:[#allocation2 + $0xe0] sm:$0xff] %vm279, 0.0
      %310 = vst.msk [vmem:[#allocation2 + $0xe8] sm:$0x3] %vm282, 0.0
      %311 = vst.msk [vmem:[#allocation2 + $0xf0] sm:$0xff] %vm279, 0.0
      %312 = vst.msk [vmem:[#allocation2 + $0xf8] sm:$0xff] %vm279, 0.0
      %313 = vst.msk [vmem:[#allocation2 + $0x100] sm:$0x3] %vm282, 0.0
      %314 = vst.msk [vmem:[#allocation2 + $0x108] sm:$0xff] %vm279, 0.0
      %315 = vst.msk [vmem:[#allocation2 + $0x110] sm:$0xff] %vm279, 0.0
      %316 = vst.msk [vmem:[#allocation2 + $0x118] sm:$0x3] %vm282, 0.0
      %317 = vst.msk [vmem:[#allocation2 + $0x120] sm:$0xff] %vm279, 0.0
      %318 = vst.msk [vmem:[#allocation2 + $0x128] sm:$0xff] %vm279, 0.0
      %319 = vst.msk [vmem:[#allocation2 + $0x130] sm:$0x3] %vm282, 0.0
      %320 = vst.msk [vmem:[#allocation2 + $0x138] sm:$0xff] %vm279, 0.0
      %321 = vst.msk [vmem:[#allocation2 + $0x140] sm:$0xff] %vm279, 0.0
      %322 = vst.msk [vmem:[#allocation2 + $0x148] sm:$0x3] %vm282, 0.0
      %323 = vst.msk [vmem:[#allocation2 + $0x150] sm:$0xff] %vm279, 0.0
      %324 = vst.msk [vmem:[#allocation2 + $0x158] sm:$0xff] %vm279, 0.0
      %325 = vst.msk [vmem:[#allocation2 + $0x160] sm:$0x3] %vm282, 0.0
      %326 = vst.msk [vmem:[#allocation2 + $0x168] sm:$0xff] %vm279, 0.0
      %327 = vst.msk [vmem:[#allocation2 + $0x170] sm:$0xff] %vm279, 0.0
      %328 = vst.msk [vmem:[#allocation2 + $0x178] sm:$0x3] %vm282, 0.0
      %329 = vst.msk [vmem:[#allocation2 + $0x180] sm:$0xff] %vm279, 0.0
      %330 = vst.msk [vmem:[#allocation2 + $0x188] sm:$0xff] %vm279, 0.0
      %331 = vst.msk [vmem:[#allocation2 + $0x190] sm:$0x3] %vm282, 0.0
      %332 = vst.msk [vmem:[#allocation2 + $0x198] sm:$0xff] %vm279, 0.0
      %333 = vst.msk [vmem:[#allocation2 + $0x1a0] sm:$0xff] %vm279, 0.0
      %334 = vst.msk [vmem:[#allocation2 + $0x1a8] sm:$0x3] %vm282, 0.0
      %v335 = vld [vmem:[%s273] sm:$0xff]
      %v336 = vld [vmem:[%s273 + $0x8] sm:$0xff]
      %v337 = vld [vmem:[%s273 + $0x10] sm:$0xff]
      %v338 = vld [vmem:[%s273 + $0x18] sm:$0xff]
      %v339 = vld [vmem:[%s273 + $0x20] sm:$0xff]
      %v340 = vld [vmem:[%s273 + $0x28] sm:$0xff]
      %v341 = vld [vmem:[%s273 + $0x30] sm:$0xff]
      %v342 = vld [vmem:[%s273 + $0x38] sm:$0xff]
      %v343 = vld [vmem:[%s273 + $0x40] sm:$0xff]
      %v344 = vld [vmem:[%s273 + $0x48] sm:$0xff]
      %v345 = vld [vmem:[%s273 + $0x50] sm:$0xff]
      %v346 = vld [vmem:[%s273 + $0x58] sm:$0xff]
      %v347 = vld [vmem:[%s273 + $0x60] sm:$0xff]
      %v348 = vld [vmem:[%s273 + $0x68] sm:$0xff]
      %v349 = vld [vmem:[%s273 + $0x70] sm:$0xff]
      %v350 = vld [vmem:[%s273 + $0x78] sm:$0xff]
      %v351 = vld [vmem:[%s273 + $0x80] sm:$0xff]
      %v352 = vld [vmem:[%s273 + $0x88] sm:$0xff]
      %v353 = vld [vmem:[%s273 + $0x90] sm:$0xff]
      %v354 = vld [vmem:[%s273 + $0x98] sm:$0xff]
      %v355 = vld [vmem:[%s273 + $0xa0] sm:$0xff]
      %v356 = vld [vmem:[%s273 + $0xa8] sm:$0xff]
      %v357 = vld [vmem:[%s273 + $0xb0] sm:$0xff]
      %v358 = vld [vmem:[%s273 + $0xb8] sm:$0xff]
      %v359 = vld [vmem:[%s273 + $0xc0] sm:$0xff]
      %v360 = vld [vmem:[%s273 + $0xc8] sm:$0xff]
      %v361 = vld [vmem:[%s273 + $0xd0] sm:$0xff]
      %v362 = vld [vmem:[%s273 + $0xd8] sm:$0xff]
      %v363 = vld [vmem:[%s273 + $0xe0] sm:$0xff]
      %v364 = vld [vmem:[%s273 + $0xe8] sm:$0xff]
      %v365 = vld [vmem:[%s273 + $0xf0] sm:$0xff]
      %v366 = vld [vmem:[%s273 + $0xf8] sm:$0xff]
      %v367 = vld [vmem:[%s1] sm:$0xf]
      %v368 = vld [vmem:[%s2] sm:$0x1]
      %v370 = vlaneseq
      %v371 = vshrl.u32 %v370, 7
      %v372 = vsub.s32 0, %v371
      %v373 = vrot.slane %v368, %v372
      %vm375 = vcmask 31744
      %v377 = vsel %vm375, %v335, 0
      %v380 = vsel %vm375, %v336, 0
      %v383 = vsel %vm375, %v337, 0
      %v386 = vsel %vm375, %v338, 0
      %v389 = vsel %vm375, %v339, 0
      %v392 = vsel %vm375, %v340, 0
      %v395 = vsel %vm375, %v341, 0
      %v398 = vsel %vm375, %v342, 0
      %v401 = vsel %vm375, %v343, 0
      %v404 = vsel %vm375, %v344, 0
      %v407 = vsel %vm375, %v345, 0
      %v410 = vsel %vm375, %v346, 0
      %v413 = vsel %vm375, %v347, 0
      %v416 = vsel %vm375, %v348, 0
      %v419 = vsel %vm375, %v349, 0
      %v422 = vsel %vm375, %v350, 0
      %v425 = vsel %vm375, %v351, 0
      %v428 = vsel %vm375, %v352, 0
      %v431 = vsel %vm375, %v353, 0
      %v434 = vsel %vm375, %v354, 0
      %v437 = vsel %vm375, %v355, 0
      %v440 = vsel %vm375, %v356, 0
      %v443 = vsel %vm375, %v357, 0
      %v446 = vsel %vm375, %v358, 0
      %v449 = vsel %vm375, %v359, 0
      %v452 = vsel %vm375, %v360, 0
      %v455 = vsel %vm375, %v361, 0
      %v458 = vsel %vm375, %v362, 0
      %v461 = vsel %vm375, %v363, 0
      %v464 = vsel %vm375, %v364, 0
      %v467 = vsel %vm375, %v365, 0
      %v470 = vsel %vm375, %v366, 0
      %vm472 = vcmask 1043456
      %v474 = vsel %vm472, %v367, 0
      %476 = vmatprep.subr.mxu0 0.0
      %477 = vmatpush1.msra.mxu0 %v474
      %478 = vmatprep.subr.mxu0 0.0
      %479 = vmatpush1.msra.mxu0 0.0
      %480 = vmatprep.subr.mxu0 0.0
      %481 = vmatpush1.msra.mxu0 0.0
      %482 = vmatprep.subr.mxu0 0.0
      %483 = vmatpush1.msra.mxu0 0.0
      %484 = vmatprep.subr.mxu0 0.0
      %485 = vmatpush1.msra.mxu0 0.0
      %486 = vmatprep.subr.mxu0 0.0
      %487 = vmatpush1.msra.mxu0 0.0
      %488 = vmatprep.subr.mxu0 0.0
      %489 = vmatpush1.msra.mxu0 0.0
      %490 = vmatprep.subr.mxu0 0.0
      %491 = vmatpush1.msra.mxu0 0.0
      %492 = vmatprep.subr.mxu0 0.0
      %493 = vmatpush1.msra.mxu0 0.0
      %494 = vmatprep.subr.mxu0 0.0
      %495 = vmatpush1.msra.mxu0 0.0
      %496 = vmatprep.subr.mxu0 0.0
      %497 = vmatpush1.msra.mxu0 0.0
      %498 = vmatprep.subr.mxu0 0.0
      %499 = vmatpush1.msra.mxu0 0.0
      %500 = vmatprep.subr.mxu0 0.0
      %501 = vmatpush1.msra.mxu0 0.0
      %502 = vmatprep.subr.mxu0 0.0
      %503 = vmatpush1.msra.mxu0 0.0
      %504 = vmatprep.subr.mxu0 0.0
      %505 = vmatpush1.msra.mxu0 0.0
      %506 = vmatprep.subr.mxu0 0.0
      %507 = vmatpush1.msra.mxu0 0.0
      %508 = vmatprep.subr.mxu0 0.0
      %509 = vmatpush1.msra.mxu0 0.0
      %510 = vmatprep.subr.mxu0 0.0
      %511 = vmatpush1.msra.mxu0 0.0
      %512 = vmatprep.subr.mxu0 0.0
      %513 = vmatpush1.msra.mxu0 0.0
      %514 = vmatprep.subr.mxu0 0.0
      %515 = vmatpush1.msra.mxu0 0.0
      %516 = vmatprep.subr.mxu0 0.0
      %517 = vmatpush1.msra.mxu0 0.0
      %518 = vmatprep.subr.mxu0 0.0
      %519 = vmatpush1.msra.mxu0 0.0
      %520 = vmatprep.subr.mxu0 0.0
      %521 = vmatpush1.msra.mxu0 0.0
      %522 = vmatprep.subr.mxu0 0.0
      %523 = vmatpush1.msra.mxu0 0.0
      %524 = vmatprep.subr.mxu0 0.0
      %525 = vmatpush1.msra.mxu0 0.0
      %526 = vmatprep.subr.mxu0 0.0
      %527 = vmatpush1.msra.mxu0 0.0
      %528 = vmatprep.subr.mxu0 0.0
      %529 = vmatpush1.msra.mxu0 0.0
      %530 = vmatprep.subr.mxu0 0.0
      %531 = vmatpush1.msra.mxu0 0.0
      %532 = vmatprep.subr.mxu0 0.0
      %533 = vmatpush1.msra.mxu0 0.0
      %534 = vmatprep.subr.mxu0 0.0
      %535 = vmatpush1.msra.mxu0 0.0
      %536 = vmatprep.subr.mxu0 0.0
      %537 = vmatpush1.msra.mxu0 0.0
      %538 = vmatprep.subr.mxu0 0.0
      %539 = vmatpush1.msra.mxu0 0.0
      %540 = vmatprep.mubr.f32.mxu0 0.0
      %541 = vmatmul.mubr.f32.gmra.mrb[0].mxu0 %v377
      %v542 = vpop.f32.mrb[0].mxu0
      %v543 = vadd.f32 %v373, %v542
      %v544 = vpop.f32.mrb[0].mxu0
      %545 = vmatprep.mubr.f32.mxu0 0.0
      %546 = vmatmul.mubr.f32.gmra.mrb[0].mxu0 %v380
      %v547 = vpop.f32.mrb[0].mxu0
      %v548 = vadd.f32 %v373, %v547
      %v549 = vpop.f32.mrb[0].mxu0
      %550 = vmatprep.mubr.f32.mxu0 0.0
      %551 = vmatmul.mubr.f32.gmra.mrb[0].mxu0 %v383
      %v552 = vpop.f32.mrb[0].mxu0
      %v553 = vadd.f32 %v373, %v552
      %v554 = vpop.f32.mrb[0].mxu0
      %555 = vmatprep.mubr.f32.mxu0 0.0
      %556 = vmatmul.mubr.f32.gmra.mrb[0].mxu0 %v386
      %v557 = vpop.f32.mrb[0].mxu0
      %v558 = vadd.f32 %v373, %v557
      %v559 = vpop.f32.mrb[0].mxu0
      %560 = vmatprep.mubr.f32.mxu0 0.0
      %561 = vmatmul.mubr.f32.gmra.mrb[0].mxu0 %v389
      %v562 = vpop.f32.mrb[0].mxu0
      %v563 = vadd.f32 %v373, %v562
      %v564 = vpop.f32.mrb[0].mxu0
      %565 = vmatprep.mubr.f32.mxu0 0.0
      %566 = vmatmul.mubr.f32.gmra.mrb[0].mxu0 %v392
      %v567 = vpop.f32.mrb[0].mxu0
      %v568 = vadd.f32 %v373, %v567
      %v569 = vpop.f32.mrb[0].mxu0
      %570 = vmatprep.mubr.f32.mxu0 0.0
      %571 = vmatmul.mubr.f32.gmra.mrb[0].mxu0 %v395
      %v572 = vpop.f32.mrb[0].mxu0
      %v573 = vadd.f32 %v373, %v572
      %v574 = vpop.f32.mrb[0].mxu0
      %575 = vmatprep.mubr.f32.mxu0 0.0
      %576 = vmatmul.mubr.f32.gmra.mrb[0].mxu0 %v398
      %v577 = vpop.f32.mrb[0].mxu0
      %v578 = vadd.f32 %v373, %v577
      %v579 = vpop.f32.mrb[0].mxu0
      %580 = vmatprep.mubr.f32.mxu0 0.0
      %581 = vmatmul.mubr.f32.gmra.mrb[0].mxu0 %v401
      %v582 = vpop.f32.mrb[0].mxu0
      %v583 = vadd.f32 %v373, %v582
      %v584 = vpop.f32.mrb[0].mxu0
      %585 = vmatprep.mubr.f32.mxu0 0.0
      %586 = vmatmul.mubr.f32.gmra.mrb[0].mxu0 %v404
      %v587 = vpop.f32.mrb[0].mxu0
      %v588 = vadd.f32 %v373, %v587
      %v589 = vpop.f32.mrb[0].mxu0
      %590 = vmatprep.mubr.f32.mxu0 0.0
      %591 = vmatmul.mubr.f32.gmra.mrb[0].mxu0 %v407
      %v592 = vpop.f32.mrb[0].mxu0
      %v593 = vadd.f32 %v373, %v592
      %v594 = vpop.f32.mrb[0].mxu0
      %595 = vmatprep.mubr.f32.mxu0 0.0
      %596 = vmatmul.mubr.f32.gmra.mrb[0].mxu0 %v410
      %v597 = vpop.f32.mrb[0].mxu0
      %v598 = vadd.f32 %v373, %v597
      %v599 = vpop.f32.mrb[0].mxu0
      %600 = vmatprep.mubr.f32.mxu0 0.0
      %601 = vmatmul.mubr.f32.gmra.mrb[0].mxu0 %v413
      %v602 = vpop.f32.mrb[0].mxu0
      %v603 = vadd.f32 %v373, %v602
      %v604 = vpop.f32.mrb[0].mxu0
      %605 = vmatprep.mubr.f32.mxu0 0.0
      %606 = vmatmul.mubr.f32.gmra.mrb[0].mxu0 %v416
      %v607 = vpop.f32.mrb[0].mxu0
      %v608 = vadd.f32 %v373, %v607
      %v609 = vpop.f32.mrb[0].mxu0
      %610 = vmatprep.mubr.f32.mxu0 0.0
      %611 = vmatmul.mubr.f32.gmra.mrb[0].mxu0 %v419
      %v612 = vpop.f32.mrb[0].mxu0
      %v613 = vadd.f32 %v373, %v612
      %v614 = vpop.f32.mrb[0].mxu0
      %615 = vmatprep.mubr.f32.mxu0 0.0
      %616 = vmatmul.mubr.f32.gmra.mrb[0].mxu0 %v422
      %v617 = vpop.f32.mrb[0].mxu0
      %v618 = vadd.f32 %v373, %v617
      %v619 = vpop.f32.mrb[0].mxu0
      %620 = vmatprep.mubr.f32.mxu0 0.0
      %621 = vmatmul.mubr.f32.gmra.mrb[0].mxu0 %v425
      %v622 = vpop.f32.mrb[0].mxu0
      %v623 = vadd.f32 %v373, %v622
      %v624 = vpop.f32.mrb[0].mxu0
      %625 = vmatprep.mubr.f32.mxu0 0.0
      %626 = vmatmul.mubr.f32.gmra.mrb[0].mxu0 %v428
      %v627 = vpop.f32.mrb[0].mxu0
      %v628 = vadd.f32 %v373, %v627
      %v629 = vpop.f32.mrb[0].mxu0
      %630 = vmatprep.mubr.f32.mxu0 0.0
      %631 = vmatmul.mubr.f32.gmra.mrb[0].mxu0 %v431
      %v632 = vpop.f32.mrb[0].mxu0
      %v633 = vadd.f32 %v373, %v632
      %v634 = vpop.f32.mrb[0].mxu0
      %635 = vmatprep.mubr.f32.mxu0 0.0
      %636 = vmatmul.mubr.f32.gmra.mrb[0].mxu0 %v434
      %v637 = vpop.f32.mrb[0].mxu0
      %v638 = vadd.f32 %v373, %v637
      %v639 = vpop.f32.mrb[0].mxu0
      %640 = vmatprep.mubr.f32.mxu0 0.0
      %641 = vmatmul.mubr.f32.gmra.mrb[0].mxu0 %v437
      %v642 = vpop.f32.mrb[0].mxu0
      %v643 = vadd.f32 %v373, %v642
      %v644 = vpop.f32.mrb[0].mxu0
      %645 = vmatprep.mubr.f32.mxu0 0.0
      %646 = vmatmul.mubr.f32.gmra.mrb[0].mxu0 %v440
      %v647 = vpop.f32.mrb[0].mxu0
      %v648 = vadd.f32 %v373, %v647
      %v649 = vpop.f32.mrb[0].mxu0
      %650 = vmatprep.mubr.f32.mxu0 0.0
      %651 = vmatmul.mubr.f32.gmra.mrb[0].mxu0 %v443
      %v652 = vpop.f32.mrb[0].mxu0
      %v653 = vadd.f32 %v373, %v652
      %v654 = vpop.f32.mrb[0].mxu0
      %655 = vmatprep.mubr.f32.mxu0 0.0
      %656 = vmatmul.mubr.f32.gmra.mrb[0].mxu0 %v446
      %v657 = vpop.f32.mrb[0].mxu0
      %v658 = vadd.f32 %v373, %v657
      %v659 = vpop.f32.mrb[0].mxu0
      %660 = vmatprep.mubr.f32.mxu0 0.0
      %661 = vmatmul.mubr.f32.gmra.mrb[0].mxu0 %v449
      %v662 = vpop.f32.mrb[0].mxu0
      %v663 = vadd.f32 %v373, %v662
      %v664 = vpop.f32.mrb[0].mxu0
      %665 = vmatprep.mubr.f32.mxu0 0.0
      %666 = vmatmul.mubr.f32.gmra.mrb[0].mxu0 %v452
      %v667 = vpop.f32.mrb[0].mxu0
      %v668 = vadd.f32 %v373, %v667
      %v669 = vpop.f32.mrb[0].mxu0
      %670 = vmatprep.mubr.f32.mxu0 0.0
      %671 = vmatmul.mubr.f32.gmra.mrb[0].mxu0 %v455
      %v672 = vpop.f32.mrb[0].mxu0
      %v673 = vadd.f32 %v373, %v672
      %v674 = vpop.f32.mrb[0].mxu0
      %675 = vmatprep.mubr.f32.mxu0 0.0
      %676 = vmatmul.mubr.f32.gmra.mrb[0].mxu0 %v458
      %v677 = vpop.f32.mrb[0].mxu0
      %v678 = vadd.f32 %v373, %v677
      %v679 = vpop.f32.mrb[0].mxu0
      %680 = vmatprep.mubr.f32.mxu0 0.0
      %681 = vmatmul.mubr.f32.gmra.mrb[0].mxu0 %v461
      %v682 = vpop.f32.mrb[0].mxu0
      %v683 = vadd.f32 %v373, %v682
      %v684 = vpop.f32.mrb[0].mxu0
      %685 = vmatprep.mubr.f32.mxu0 0.0
      %686 = vmatmul.mubr.f32.gmra.mrb[0].mxu0 %v464
      %v687 = vpop.f32.mrb[0].mxu0
      %v688 = vadd.f32 %v373, %v687
      %v689 = vpop.f32.mrb[0].mxu0
      %690 = vmatprep.mubr.f32.mxu0 0.0
      %691 = vmatmul.mubr.f32.gmra.mrb[0].mxu0 %v467
      %v692 = vpop.f32.mrb[0].mxu0
      %v693 = vadd.f32 %v373, %v692
      %v694 = vpop.f32.mrb[0].mxu0
      %695 = vmatprep.mubr.f32.mxu0 0.0
      %696 = vmatmul.mubr.f32.gmra.mrb[0].mxu0 %v470
      %v697 = vpop.f32.mrb[0].mxu0
      %v698 = vadd.f32 %v373, %v697
      %v699 = vpop.f32.mrb[0].mxu0
      %700 = vdwg.mxu0
      %v701 = vmax.f32 %v543, 0.0
      %v702 = vmax.f32 %v548, 0.0
      %v703 = vmax.f32 %v553, 0.0
      %v704 = vmax.f32 %v558, 0.0
      %v705 = vmax.f32 %v563, 0.0
      %v706 = vmax.f32 %v568, 0.0
      %v707 = vmax.f32 %v573, 0.0
      %v708 = vmax.f32 %v578, 0.0
      %v709 = vmax.f32 %v583, 0.0
      %v710 = vmax.f32 %v588, 0.0
      %v711 = vmax.f32 %v593, 0.0
      %v712 = vmax.f32 %v598, 0.0
      %v713 = vmax.f32 %v603, 0.0
      %v714 = vmax.f32 %v608, 0.0
      %v715 = vmax.f32 %v613, 0.0
      %v716 = vmax.f32 %v618, 0.0
      %v717 = vmax.f32 %v623, 0.0
      %v718 = vmax.f32 %v628, 0.0
      %v719 = vmax.f32 %v633, 0.0
      %v720 = vmax.f32 %v638, 0.0
      %v721 = vmax.f32 %v643, 0.0
      %v722 = vmax.f32 %v648, 0.0
      %v723 = vmax.f32 %v653, 0.0
      %v724 = vmax.f32 %v658, 0.0
      %v725 = vmax.f32 %v663, 0.0
      %v726 = vmax.f32 %v668, 0.0
      %v727 = vmax.f32 %v673, 0.0
      %v728 = vmax.f32 %v678, 0.0
      %v729 = vmax.f32 %v683, 0.0
      %v730 = vmax.f32 %v688, 0.0
      %v731 = vmax.f32 %v693, 0.0
      %v732 = vmax.f32 %v698, 0.0
      %s733 = scalar_lea.vmem [#allocation2], 24
      %734 = vst.msk [vmem:[%s733 + $0x1] sm:$0xff] %vm279, %v701
      %735 = vst.msk [vmem:[%s733 + $0x9] sm:$0xff] %vm279, %v702
      %736 = vst.msk [vmem:[%s733 + $0x19] sm:$0xff] %vm279, %v703
      %737 = vst.msk [vmem:[%s733 + $0x21] sm:$0xff] %vm279, %v704
      %738 = vst.msk [vmem:[%s733 + $0x31] sm:$0xff] %vm279, %v705
      %739 = vst.msk [vmem:[%s733 + $0x39] sm:$0xff] %vm279, %v706
      %740 = vst.msk [vmem:[%s733 + $0x49] sm:$0xff] %vm279, %v707
      %741 = vst.msk [vmem:[%s733 + $0x51] sm:$0xff] %vm279, %v708
      %742 = vst.msk [vmem:[%s733 + $0x61] sm:$0xff] %vm279, %v709
      %743 = vst.msk [vmem:[%s733 + $0x69] sm:$0xff] %vm279, %v710
      %744 = vst.msk [vmem:[%s733 + $0x79] sm:$0xff] %vm279, %v711
      %745 = vst.msk [vmem:[%s733 + $0x81] sm:$0xff] %vm279, %v712
      %746 = vst.msk [vmem:[%s733 + $0x91] sm:$0xff] %vm279, %v713
      %747 = vst.msk [vmem:[%s733 + $0x99] sm:$0xff] %vm279, %v714
      %748 = vst.msk [vmem:[%s733 + $0xa9] sm:$0xff] %vm279, %v715
      %749 = vst.msk [vmem:[%s733 + $0xb1] sm:$0xff] %vm279, %v716
      %750 = vst.msk [vmem:[%s733 + $0xc1] sm:$0xff] %vm279, %v717
      %751 = vst.msk [vmem:[%s733 + $0xc9] sm:$0xff] %vm279, %v718
      %752 = vst.msk [vmem:[%s733 + $0xd9] sm:$0xff] %vm279, %v719
      %753 = vst.msk [vmem:[%s733 + $0xe1] sm:$0xff] %vm279, %v720
      %754 = vst.msk [vmem:[%s733 + $0xf1] sm:$0xff] %vm279, %v721
      %755 = vst.msk [vmem:[%s733 + $0xf9] sm:$0xff] %vm279, %v722
      %756 = vst.msk [vmem:[%s733 + $0x109] sm:$0xff] %vm279, %v723
      %757 = vst.msk [vmem:[%s733 + $0x111] sm:$0xff] %vm279, %v724
      %758 = vst.msk [vmem:[%s733 + $0x121] sm:$0xff] %vm279, %v725
      %759 = vst.msk [vmem:[%s733 + $0x129] sm:$0xff] %vm279, %v726
      %760 = vst.msk [vmem:[%s733 + $0x139] sm:$0xff] %vm279, %v727
      %761 = vst.msk [vmem:[%s733 + $0x141] sm:$0xff] %vm279, %v728
      %762 = vst.msk [vmem:[%s733 + $0x151] sm:$0xff] %vm279, %v729
      %763 = vst.msk [vmem:[%s733 + $0x159] sm:$0xff] %vm279, %v730
      %764 = vst.msk [vmem:[%s733 + $0x169] sm:$0xff] %vm279, %v731
      %765 = vst.msk [vmem:[%s733 + $0x171] sm:$0xff] %vm279, %v732
      %v766 = vld [vmem:[%s3] sm:$0x1]
      %v767 = vld [vmem:[%s3 + $0x1] sm:$0x1]
      %v768 = vld [vmem:[%s3 + $0x2] sm:$0x1]
      %v769 = vld [vmem:[%s3 + $0x3] sm:$0x1]
      %v770 = vld [vmem:[%s3 + $0x4] sm:$0x1]
      %v771 = vld [vmem:[%s3 + $0x5] sm:$0x1]
      %v772 = vld [vmem:[%s3 + $0x6] sm:$0x1]
      %v773 = vld [vmem:[%s3 + $0x7] sm:$0x1]
      %v774 = vld [vmem:[%s3 + $0x8] sm:$0x1]
      %v775 = vld [vmem:[#allocation2] sm:$0xff]
      %v776 = vld [vmem:[#allocation2 + $0x8] sm:$0xff]
      %v777 = vld [vmem:[#allocation2 + $0x18] sm:$0xff]
      %v778 = vld [vmem:[#allocation2 + $0x20] sm:$0xff]
      %v779 = vld [vmem:[#allocation2 + $0x30] sm:$0xff]
      %v780 = vld [vmem:[#allocation2 + $0x38] sm:$0xff]
      %v781 = vld [vmem:[#allocation2 + $0x48] sm:$0xff]
      %v782 = vld [vmem:[#allocation2 + $0x50] sm:$0xff]
      %v783 = vld [vmem:[#allocation2 + $0x60] sm:$0xff]
      %v784 = vld [vmem:[#allocation2 + $0x68] sm:$0xff]
      %v785 = vld [vmem:[#allocation2 + $0x78] sm:$0xff]
      %v786 = vld [vmem:[#allocation2 + $0x80] sm:$0xff]
      %v787 = vld [vmem:[#allocation2 + $0x90] sm:$0xff]
      %v788 = vld [vmem:[#allocation2 + $0x98] sm:$0xff]
      %v789 = vld [vmem:[#allocation2 + $0xa8] sm:$0xff]
      %v790 = vld [vmem:[#allocation2 + $0xb0] sm:$0xff]
      %v791 = vld [vmem:[#allocation2 + $0xc0] sm:$0xff]
      %v792 = vld [vmem:[#allocation2 + $0xc8] sm:$0xff]
      %v793 = vld [vmem:[#allocation2 + $0xd8] sm:$0xff]
      %v794 = vld [vmem:[#allocation2 + $0xe0] sm:$0xff]
      %v795 = vld [vmem:[#allocation2 + $0xf0] sm:$0xff]
      %v796 = vld [vmem:[#allocation2 + $0xf8] sm:$0xff]
      %v797 = vld [vmem:[#allocation2 + $0x108] sm:$0xff]
      %v798 = vld [vmem:[#allocation2 + $0x110] sm:$0xff]
      %v799 = vld [vmem:[#allocation2 + $0x120] sm:$0xff]
      %v800 = vld [vmem:[#allocation2 + $0x128] sm:$0xff]
      %v801 = vld [vmem:[#allocation2 + $0x138] sm:$0xff]
      %v802 = vld [vmem:[#allocation2 + $0x140] sm:$0xff]
      %v803 = vld [vmem:[#allocation2 + $0x150] sm:$0xff]
      %v804 = vld [vmem:[#allocation2 + $0x158] sm:$0xff]
      %v805 = vld [vmem:[#allocation2 + $0x168] sm:$0xff]
      %v806 = vld [vmem:[#allocation2 + $0x170] sm:$0xff]
      %v808 = vlaneseq
      %v809 = vshrl.u32 %v808, 7
      %v810 = vsub.s32 0, %v809
      %v811 = vrot.slane %v766, %v810
      %v813 = vmul.f32 %v775, %v811
      %v814 = vmul.f32 %v776, %v811
      %v815 = vmul.f32 %v777, %v811
      %v816 = vmul.f32 %v778, %v811
      %v817 = vmul.f32 %v779, %v811
      %v818 = vmul.f32 %v780, %v811
      %v819 = vmul.f32 %v781, %v811
      %v820 = vmul.f32 %v782, %v811
      %v821 = vmul.f32 %v783, %v811
      %v822 = vmul.f32 %v784, %v811
      %v823 = vmul.f32 %v785, %v811
      %v824 = vmul.f32 %v786, %v811
      %v825 = vmul.f32 %v787, %v811
      %v826 = vmul.f32 %v788, %v811
      %v827 = vmul.f32 %v789, %v811
      %v828 = vmul.f32 %v790, %v811
      %v829 = vmul.f32 %v791, %v811
      %v830 = vmul.f32 %v792, %v811
      %v831 = vmul.f32 %v793, %v811
      %v832 = vmul.f32 %v794, %v811
      %v833 = vmul.f32 %v795, %v811
      %v834 = vmul.f32 %v796, %v811
      %v835 = vmul.f32 %v797, %v811
      %v836 = vmul.f32 %v798, %v811
      %v837 = vmul.f32 %v799, %v811
      %v838 = vmul.f32 %v800, %v811
      %v839 = vmul.f32 %v801, %v811
      %v840 = vmul.f32 %v802, %v811
      %v841 = vmul.f32 %v803, %v811
      %v842 = vmul.f32 %v804, %v811
      %v843 = vmul.f32 %v805, %v811
      %v844 = vmul.f32 %v806, %v811
      %v845 = vadd.f32 %v813, 0.0
      %v846 = vadd.f32 %v814, 0.0
      %v847 = vadd.f32 %v815, 0.0
      %v848 = vadd.f32 %v816, 0.0
      %v849 = vadd.f32 %v817, 0.0
      %v850 = vadd.f32 %v818, 0.0
      %v851 = vadd.f32 %v819, 0.0
      %v852 = vadd.f32 %v820, 0.0
      %v853 = vadd.f32 %v821, 0.0
      %v854 = vadd.f32 %v822, 0.0
      %v855 = vadd.f32 %v823, 0.0
      %v856 = vadd.f32 %v824, 0.0
      %v857 = vadd.f32 %v825, 0.0
      %v858 = vadd.f32 %v826, 0.0
      %v859 = vadd.f32 %v827, 0.0
      %v860 = vadd.f32 %v828, 0.0
      %v861 = vadd.f32 %v829, 0.0
      %v862 = vadd.f32 %v830, 0.0
      %v863 = vadd.f32 %v831, 0.0
      %v864 = vadd.f32 %v832, 0.0
      %v865 = vadd.f32 %v833, 0.0
      %v866 = vadd.f32 %v834, 0.0
      %v867 = vadd.f32 %v835, 0.0
      %v868 = vadd.f32 %v836, 0.0
      %v869 = vadd.f32 %v837, 0.0
      %v870 = vadd.f32 %v838, 0.0
      %v871 = vadd.f32 %v839, 0.0
      %v872 = vadd.f32 %v840, 0.0
      %v873 = vadd.f32 %v841, 0.0
      %v874 = vadd.f32 %v842, 0.0
      %v875 = vadd.f32 %v843, 0.0
      %v876 = vadd.f32 %v844, 0.0
      %v877 = vld [vmem:[#allocation2 + $0x1] sm:$0xff]
      %v878 = vld [vmem:[#allocation2 + $0x9] sm:$0xff]
      %v879 = vld [vmem:[#allocation2 + $0x19] sm:$0xff]
      %v880 = vld [vmem:[#allocation2 + $0x21] sm:$0xff]
      %v881 = vld [vmem:[#allocation2 + $0x31] sm:$0xff]
      %v882 = vld [vmem:[#allocation2 + $0x39] sm:$0xff]
      %v883 = vld [vmem:[#allocation2 + $0x49] sm:$0xff]
      %v884 = vld [vmem:[#allocation2 + $0x51] sm:$0xff]
      %v885 = vld [vmem:[#allocation2 + $0x61] sm:$0xff]
      %v886 = vld [vmem:[#allocation2 + $0x69] sm:$0xff]
      %v887 = vld [vmem:[#allocation2 + $0x79] sm:$0xff]
      %v888 = vld [vmem:[#allocation2 + $0x81] sm:$0xff]
      %v889 = vld [vmem:[#allocation2 + $0x91] sm:$0xff]
      %v890 = vld [vmem:[#allocation2 + $0x99] sm:$0xff]
      %v891 = vld [vmem:[#allocation2 + $0xa9] sm:$0xff]
      %v892 = vld [vmem:[#allocation2 + $0xb1] sm:$0xff]
      %v893 = vld [vmem:[#allocation2 + $0xc1] sm:$0xff]
      %v894 = vld [vmem:[#allocation2 + $0xc9] sm:$0xff]
      %v895 = vld [vmem:[#allocation2 + $0xd9] sm:$0xff]
      %v896 = vld [vmem:[#allocation2 + $0xe1] sm:$0xff]
      %v897 = vld [vmem:[#allocation2 + $0xf1] sm:$0xff]
      %v898 = vld [vmem:[#allocation2 + $0xf9] sm:$0xff]
      %v899 = vld [vmem:[#allocation2 + $0x109] sm:$0xff]
      %v900 = vld [vmem:[#allocation2 + $0x111] sm:$0xff]
      %v901 = vld [vmem:[#allocation2 + $0x121] sm:$0xff]
      %v902 = vld [vmem:[#allocation2 + $0x129] sm:$0xff]
      %v903 = vld [vmem:[#allocation2 + $0x139] sm:$0xff]
      %v904 = vld [vmem:[#allocation2 + $0x141] sm:$0xff]
      %v905 = vld [vmem:[#allocation2 + $0x151] sm:$0xff]
      %v906 = vld [vmem:[#allocation2 + $0x159] sm:$0xff]
      %v907 = vld [vmem:[#allocation2 + $0x169] sm:$0xff]
      %v908 = vld [vmem:[#allocation2 + $0x171] sm:$0xff]
      %v910 = vlaneseq
      %v911 = vshrl.u32 %v910, 7
      %v912 = vsub.s32 0, %v911
      %v913 = vrot.slane %v767, %v912
      %v915 = vmul.f32 %v877, %v913
      %v916 = vmul.f32 %v878, %v913
      %v917 = vmul.f32 %v879, %v913
      %v918 = vmul.f32 %v880, %v913
      %v919 = vmul.f32 %v881, %v913
      %v920 = vmul.f32 %v882, %v913
      %v921 = vmul.f32 %v883, %v913
      %v922 = vmul.f32 %v884, %v913
      %v923 = vmul.f32 %v885, %v913
      %v924 = vmul.f32 %v886, %v913
      %v925 = vmul.f32 %v887, %v913
      %v926 = vmul.f32 %v888, %v913
      %v927 = vmul.f32 %v889, %v913
      %v928 = vmul.f32 %v890, %v913
      %v929 = vmul.f32 %v891, %v913
      %v930 = vmul.f32 %v892, %v913
      %v931 = vmul.f32 %v893, %v913
      %v932 = vmul.f32 %v894, %v913
      %v933 = vmul.f32 %v895, %v913
      %v934 = vmul.f32 %v896, %v913
      %v935 = vmul.f32 %v897, %v913
      %v936 = vmul.f32 %v898, %v913
      %v937 = vmul.f32 %v899, %v913
      %v938 = vmul.f32 %v900, %v913
      %v939 = vmul.f32 %v901, %v913
      %v940 = vmul.f32 %v902, %v913
      %v941 = vmul.f32 %v903, %v913
      %v942 = vmul.f32 %v904, %v913
      %v943 = vmul.f32 %v905, %v913
      %v944 = vmul.f32 %v906, %v913
      %v945 = vmul.f32 %v907, %v913
      %v946 = vmul.f32 %v908, %v913
      %v947 = vadd.f32 %v845, %v915
      %v948 = vadd.f32 %v846, %v916
      %v949 = vadd.f32 %v847, %v917
      %v950 = vadd.f32 %v848, %v918
      %v951 = vadd.f32 %v849, %v919
      %v952 = vadd.f32 %v850, %v920
      %v953 = vadd.f32 %v851, %v921
      %v954 = vadd.f32 %v852, %v922
      %v955 = vadd.f32 %v853, %v923
      %v956 = vadd.f32 %v854, %v924
      %v957 = vadd.f32 %v855, %v925
      %v958 = vadd.f32 %v856, %v926
      %v959 = vadd.f32 %v857, %v927
      %v960 = vadd.f32 %v858, %v928
      %v961 = vadd.f32 %v859, %v929
      %v962 = vadd.f32 %v860, %v930
      %v963 = vadd.f32 %v861, %v931
      %v964 = vadd.f32 %v862, %v932
      %v965 = vadd.f32 %v863, %v933
      %v966 = vadd.f32 %v864, %v934
      %v967 = vadd.f32 %v865, %v935
      %v968 = vadd.f32 %v866, %v936
      %v969 = vadd.f32 %v867, %v937
      %v970 = vadd.f32 %v868, %v938
      %v971 = vadd.f32 %v869, %v939
      %v972 = vadd.f32 %v870, %v940
      %v973 = vadd.f32 %v871, %v941
      %v974 = vadd.f32 %v872, %v942
      %v975 = vadd.f32 %v873, %v943
      %v976 = vadd.f32 %v874, %v944
      %v977 = vadd.f32 %v875, %v945
      %v978 = vadd.f32 %v876, %v946
      %v979 = vld [vmem:[#allocation2 + $0x2] sm:$0xff]
      %v980 = vld [vmem:[#allocation2 + $0xa] sm:$0xff]
      %v981 = vld [vmem:[#allocation2 + $0x1a] sm:$0xff]
      %v982 = vld [vmem:[#allocation2 + $0x22] sm:$0xff]
      %v983 = vld [vmem:[#allocation2 + $0x32] sm:$0xff]
      %v984 = vld [vmem:[#allocation2 + $0x3a] sm:$0xff]
      %v985 = vld [vmem:[#allocation2 + $0x4a] sm:$0xff]
      %v986 = vld [vmem:[#allocation2 + $0x52] sm:$0xff]
      %v987 = vld [vmem:[#allocation2 + $0x62] sm:$0xff]
      %v988 = vld [vmem:[#allocation2 + $0x6a] sm:$0xff]
      %v989 = vld [vmem:[#allocation2 + $0x7a] sm:$0xff]
      %v990 = vld [vmem:[#allocation2 + $0x82] sm:$0xff]
      %v991 = vld [vmem:[#allocation2 + $0x92] sm:$0xff]
      %v992 = vld [vmem:[#allocation2 + $0x9a] sm:$0xff]
      %v993 = vld [vmem:[#allocation2 + $0xaa] sm:$0xff]
      %v994 = vld [vmem:[#allocation2 + $0xb2] sm:$0xff]
      %v995 = vld [vmem:[#allocation2 + $0xc2] sm:$0xff]
      %v996 = vld [vmem:[#allocation2 + $0xca] sm:$0xff]
      %v997 = vld [vmem:[#allocation2 + $0xda] sm:$0xff]
      %v998 = vld [vmem:[#allocation2 + $0xe2] sm:$0xff]
      %v999 = vld [vmem:[#allocation2 + $0xf2] sm:$0xff]
      %v1000 = vld [vmem:[#allocation2 + $0xfa] sm:$0xff]
      %v1001 = vld [vmem:[#allocation2 + $0x10a] sm:$0xff]
      %v1002 = vld [vmem:[#allocation2 + $0x112] sm:$0xff]
      %v1003 = vld [vmem:[#allocation2 + $0x122] sm:$0xff]
      %v1004 = vld [vmem:[#allocation2 + $0x12a] sm:$0xff]
      %v1005 = vld [vmem:[#allocation2 + $0x13a] sm:$0xff]
      %v1006 = vld [vmem:[#allocation2 + $0x142] sm:$0xff]
      %v1007 = vld [vmem:[#allocation2 + $0x152] sm:$0xff]
      %v1008 = vld [vmem:[#allocation2 + $0x15a] sm:$0xff]
      %v1009 = vld [vmem:[#allocation2 + $0x16a] sm:$0xff]
      %v1010 = vld [vmem:[#allocation2 + $0x172] sm:$0xff]
      %v1012 = vlaneseq
      %v1013 = vshrl.u32 %v1012, 7
      %v1014 = vsub.s32 0, %v1013
      %v1015 = vrot.slane %v768, %v1014
      %v1017 = vmul.f32 %v979, %v1015
      %v1018 = vmul.f32 %v980, %v1015
      %v1019 = vmul.f32 %v981, %v1015
      %v1020 = vmul.f32 %v982, %v1015
      %v1021 = vmul.f32 %v983, %v1015
      %v1022 = vmul.f32 %v984, %v1015
      %v1023 = vmul.f32 %v985, %v1015
      %v1024 = vmul.f32 %v986, %v1015
      %v1025 = vmul.f32 %v987, %v1015
      %v1026 = vmul.f32 %v988, %v1015
      %v1027 = vmul.f32 %v989, %v1015
      %v1028 = vmul.f32 %v990, %v1015
      %v1029 = vmul.f32 %v991, %v1015
      %v1030 = vmul.f32 %v992, %v1015
      %v1031 = vmul.f32 %v993, %v1015
      %v1032 = vmul.f32 %v994, %v1015
      %v1033 = vmul.f32 %v995, %v1015
      %v1034 = vmul.f32 %v996, %v1015
      %v1035 = vmul.f32 %v997, %v1015
      %v1036 = vmul.f32 %v998, %v1015
      %v1037 = vmul.f32 %v999, %v1015
      %v1038 = vmul.f32 %v1000, %v1015
      %v1039 = vmul.f32 %v1001, %v1015
      %v1040 = vmul.f32 %v1002, %v1015
      %v1041 = vmul.f32 %v1003, %v1015
      %v1042 = vmul.f32 %v1004, %v1015
      %v1043 = vmul.f32 %v1005, %v1015
      %v1044 = vmul.f32 %v1006, %v1015
      %v1045 = vmul.f32 %v1007, %v1015
      %v1046 = vmul.f32 %v1008, %v1015
      %v1047 = vmul.f32 %v1009, %v1015
      %v1048 = vmul.f32 %v1010, %v1015
      %v1049 = vadd.f32 %v947, %v1017
      %v1050 = vadd.f32 %v948, %v1018
      %v1051 = vadd.f32 %v949, %v1019
      %v1052 = vadd.f32 %v950, %v1020
      %v1053 = vadd.f32 %v951, %v1021
      %v1054 = vadd.f32 %v952, %v1022
      %v1055 = vadd.f32 %v953, %v1023
      %v1056 = vadd.f32 %v954, %v1024
      %v1057 = vadd.f32 %v955, %v1025
      %v1058 = vadd.f32 %v956, %v1026
      %v1059 = vadd.f32 %v957, %v1027
      %v1060 = vadd.f32 %v958, %v1028
      %v1061 = vadd.f32 %v959, %v1029
      %v1062 = vadd.f32 %v960, %v1030
      %v1063 = vadd.f32 %v961, %v1031
      %v1064 = vadd.f32 %v962, %v1032
      %v1065 = vadd.f32 %v963, %v1033
      %v1066 = vadd.f32 %v964, %v1034
      %v1067 = vadd.f32 %v965, %v1035
      %v1068 = vadd.f32 %v966, %v1036
      %v1069 = vadd.f32 %v967, %v1037
      %v1070 = vadd.f32 %v968, %v1038
      %v1071 = vadd.f32 %v969, %v1039
      %v1072 = vadd.f32 %v970, %v1040
      %v1073 = vadd.f32 %v971, %v1041
      %v1074 = vadd.f32 %v972, %v1042
      %v1075 = vadd.f32 %v973, %v1043
      %v1076 = vadd.f32 %v974, %v1044
      %v1077 = vadd.f32 %v975, %v1045
      %v1078 = vadd.f32 %v976, %v1046
      %v1079 = vadd.f32 %v977, %v1047
      %v1080 = vadd.f32 %v978, %v1048
      %v1081 = vld [vmem:[%s733] sm:$0xff]
      %v1082 = vld [vmem:[%s733 + $0x8] sm:$0xff]
      %v1083 = vld [vmem:[%s733 + $0x18] sm:$0xff]
      %v1084 = vld [vmem:[%s733 + $0x20] sm:$0xff]
      %v1085 = vld [vmem:[%s733 + $0x30] sm:$0xff]
      %v1086 = vld [vmem:[%s733 + $0x38] sm:$0xff]
      %v1087 = vld [vmem:[%s733 + $0x48] sm:$0xff]
      %v1088 = vld [vmem:[%s733 + $0x50] sm:$0xff]
      %v1089 = vld [vmem:[%s733 + $0x60] sm:$0xff]
      %v1090 = vld [vmem:[%s733 + $0x68] sm:$0xff]
      %v1091 = vld [vmem:[%s733 + $0x78] sm:$0xff]
      %v1092 = vld [vmem:[%s733 + $0x80] sm:$0xff]
      %v1093 = vld [vmem:[%s733 + $0x90] sm:$0xff]
      %v1094 = vld [vmem:[%s733 + $0x98] sm:$0xff]
      %v1095 = vld [vmem:[%s733 + $0xa8] sm:$0xff]
      %v1096 = vld [vmem:[%s733 + $0xb0] sm:$0xff]
      %v1097 = vld [vmem:[%s733 + $0xc0] sm:$0xff]
      %v1098 = vld [vmem:[%s733 + $0xc8] sm:$0xff]
      %v1099 = vld [vmem:[%s733 + $0xd8] sm:$0xff]
      %v1100 = vld [vmem:[%s733 + $0xe0] sm:$0xff]
      %v1101 = vld [vmem:[%s733 + $0xf0] sm:$0xff]
      %v1102 = vld [vmem:[%s733 + $0xf8] sm:$0xff]
      %v1103 = vld [vmem:[%s733 + $0x108] sm:$0xff]
      %v1104 = vld [vmem:[%s733 + $0x110] sm:$0xff]
      %v1105 = vld [vmem:[%s733 + $0x120] sm:$0xff]
      %v1106 = vld [vmem:[%s733 + $0x128] sm:$0xff]
      %v1107 = vld [vmem:[%s733 + $0x138] sm:$0xff]
      %v1108 = vld [vmem:[%s733 + $0x140] sm:$0xff]
      %v1109 = vld [vmem:[%s733 + $0x150] sm:$0xff]
      %v1110 = vld [vmem:[%s733 + $0x158] sm:$0xff]
      %v1111 = vld [vmem:[%s733 + $0x168] sm:$0xff]
      %v1112 = vld [vmem:[%s733 + $0x170] sm:$0xff]
      %v1114 = vlaneseq
      %v1115 = vshrl.u32 %v1114, 7
      %v1116 = vsub.s32 0, %v1115
      %v1117 = vrot.slane %v769, %v1116
      %v1119 = vmul.f32 %v1081, %v1117
      %v1120 = vmul.f32 %v1082, %v1117
      %v1121 = vmul.f32 %v1083, %v1117
      %v1122 = vmul.f32 %v1084, %v1117
      %v1123 = vmul.f32 %v1085, %v1117
      %v1124 = vmul.f32 %v1086, %v1117
      %v1125 = vmul.f32 %v1087, %v1117
      %v1126 = vmul.f32 %v1088, %v1117
      %v1127 = vmul.f32 %v1089, %v1117
      %v1128 = vmul.f32 %v1090, %v1117
      %v1129 = vmul.f32 %v1091, %v1117
      %v1130 = vmul.f32 %v1092, %v1117
      %v1131 = vmul.f32 %v1093, %v1117
      %v1132 = vmul.f32 %v1094, %v1117
      %v1133 = vmul.f32 %v1095, %v1117
      %v1134 = vmul.f32 %v1096, %v1117
      %v1135 = vmul.f32 %v1097, %v1117
      %v1136 = vmul.f32 %v1098, %v1117
      %v1137 = vmul.f32 %v1099, %v1117
      %v1138 = vmul.f32 %v1100, %v1117
      %v1139 = vmul.f32 %v1101, %v1117
      %v1140 = vmul.f32 %v1102, %v1117
      %v1141 = vmul.f32 %v1103, %v1117
      %v1142 = vmul.f32 %v1104, %v1117
      %v1143 = vmul.f32 %v1105, %v1117
      %v1144 = vmul.f32 %v1106, %v1117
      %v1145 = vmul.f32 %v1107, %v1117
      %v1146 = vmul.f32 %v1108, %v1117
      %v1147 = vmul.f32 %v1109, %v1117
      %v1148 = vmul.f32 %v1110, %v1117
      %v1149 = vmul.f32 %v1111, %v1117
      %v1150 = vmul.f32 %v1112, %v1117
      %v1151 = vadd.f32 %v1049, %v1119
      %v1152 = vadd.f32 %v1050, %v1120
      %v1153 = vadd.f32 %v1051, %v1121
      %v1154 = vadd.f32 %v1052, %v1122
      %v1155 = vadd.f32 %v1053, %v1123
      %v1156 = vadd.f32 %v1054, %v1124
      %v1157 = vadd.f32 %v1055, %v1125
      %v1158 = vadd.f32 %v1056, %v1126
      %v1159 = vadd.f32 %v1057, %v1127
      %v1160 = vadd.f32 %v1058, %v1128
      %v1161 = vadd.f32 %v1059, %v1129
      %v1162 = vadd.f32 %v1060, %v1130
      %v1163 = vadd.f32 %v1061, %v1131
      %v1164 = vadd.f32 %v1062, %v1132
      %v1165 = vadd.f32 %v1063, %v1133
      %v1166 = vadd.f32 %v1064, %v1134
      %v1167 = vadd.f32 %v1065, %v1135
      %v1168 = vadd.f32 %v1066, %v1136
      %v1169 = vadd.f32 %v1067, %v1137
      %v1170 = vadd.f32 %v1068, %v1138
      %v1171 = vadd.f32 %v1069, %v1139
      %v1172 = vadd.f32 %v1070, %v1140
      %v1173 = vadd.f32 %v1071, %v1141
      %v1174 = vadd.f32 %v1072, %v1142
      %v1175 = vadd.f32 %v1073, %v1143
      %v1176 = vadd.f32 %v1074, %v1144
      %v1177 = vadd.f32 %v1075, %v1145
      %v1178 = vadd.f32 %v1076, %v1146
      %v1179 = vadd.f32 %v1077, %v1147
      %v1180 = vadd.f32 %v1078, %v1148
      %v1181 = vadd.f32 %v1079, %v1149
      %v1182 = vadd.f32 %v1080, %v1150
      %v1183 = vld [vmem:[%s733 + $0x1] sm:$0xff]
      %v1184 = vld [vmem:[%s733 + $0x9] sm:$0xff]
      %v1185 = vld [vmem:[%s733 + $0x19] sm:$0xff]
      %v1186 = vld [vmem:[%s733 + $0x21] sm:$0xff]
      %v1187 = vld [vmem:[%s733 + $0x31] sm:$0xff]
      %v1188 = vld [vmem:[%s733 + $0x39] sm:$0xff]
      %v1189 = vld [vmem:[%s733 + $0x49] sm:$0xff]
      %v1190 = vld [vmem:[%s733 + $0x51] sm:$0xff]
      %v1191 = vld [vmem:[%s733 + $0x61] sm:$0xff]
      %v1192 = vld [vmem:[%s733 + $0x69] sm:$0xff]
      %v1193 = vld [vmem:[%s733 + $0x79] sm:$0xff]
      %v1194 = vld [vmem:[%s733 + $0x81] sm:$0xff]
      %v1195 = vld [vmem:[%s733 + $0x91] sm:$0xff]
      %v1196 = vld [vmem:[%s733 + $0x99] sm:$0xff]
      %v1197 = vld [vmem:[%s733 + $0xa9] sm:$0xff]
      %v1198 = vld [vmem:[%s733 + $0xb1] sm:$0xff]
      %v1199 = vld [vmem:[%s733 + $0xc1] sm:$0xff]
      %v1200 = vld [vmem:[%s733 + $0xc9] sm:$0xff]
      %v1201 = vld [vmem:[%s733 + $0xd9] sm:$0xff]
      %v1202 = vld [vmem:[%s733 + $0xe1] sm:$0xff]
      %v1203 = vld [vmem:[%s733 + $0xf1] sm:$0xff]
      %v1204 = vld [vmem:[%s733 + $0xf9] sm:$0xff]
      %v1205 = vld [vmem:[%s733 + $0x109] sm:$0xff]
      %v1206 = vld [vmem:[%s733 + $0x111] sm:$0xff]
      %v1207 = vld [vmem:[%s733 + $0x121] sm:$0xff]
      %v1208 = vld [vmem:[%s733 + $0x129] sm:$0xff]
      %v1209 = vld [vmem:[%s733 + $0x139] sm:$0xff]
      %v1210 = vld [vmem:[%s733 + $0x141] sm:$0xff]
      %v1211 = vld [vmem:[%s733 + $0x151] sm:$0xff]
      %v1212 = vld [vmem:[%s733 + $0x159] sm:$0xff]
      %v1213 = vld [vmem:[%s733 + $0x169] sm:$0xff]
      %v1214 = vld [vmem:[%s733 + $0x171] sm:$0xff]
      %v1216 = vlaneseq
      %v1217 = vshrl.u32 %v1216, 7
      %v1218 = vsub.s32 0, %v1217
      %v1219 = vrot.slane %v770, %v1218
      %v1221 = vmul.f32 %v1183, %v1219
      %v1222 = vmul.f32 %v1184, %v1219
      %v1223 = vmul.f32 %v1185, %v1219
      %v1224 = vmul.f32 %v1186, %v1219
      %v1225 = vmul.f32 %v1187, %v1219
      %v1226 = vmul.f32 %v1188, %v1219
      %v1227 = vmul.f32 %v1189, %v1219
      %v1228 = vmul.f32 %v1190, %v1219
      %v1229 = vmul.f32 %v1191, %v1219
      %v1230 = vmul.f32 %v1192, %v1219
      %v1231 = vmul.f32 %v1193, %v1219
      %v1232 = vmul.f32 %v1194, %v1219
      %v1233 = vmul.f32 %v1195, %v1219
      %v1234 = vmul.f32 %v1196, %v1219
      %v1235 = vmul.f32 %v1197, %v1219
      %v1236 = vmul.f32 %v1198, %v1219
      %v1237 = vmul.f32 %v1199, %v1219
      %v1238 = vmul.f32 %v1200, %v1219
      %v1239 = vmul.f32 %v1201, %v1219
      %v1240 = vmul.f32 %v1202, %v1219
      %v1241 = vmul.f32 %v1203, %v1219
      %v1242 = vmul.f32 %v1204, %v1219
      %v1243 = vmul.f32 %v1205, %v1219
      %v1244 = vmul.f32 %v1206, %v1219
      %v1245 = vmul.f32 %v1207, %v1219
      %v1246 = vmul.f32 %v1208, %v1219
      %v1247 = vmul.f32 %v1209, %v1219
      %v1248 = vmul.f32 %v1210, %v1219
      %v1249 = vmul.f32 %v1211, %v1219
      %v1250 = vmul.f32 %v1212, %v1219
      %v1251 = vmul.f32 %v1213, %v1219
      %v1252 = vmul.f32 %v1214, %v1219
      %v1253 = vadd.f32 %v1151, %v1221
      %v1254 = vadd.f32 %v1152, %v1222
      %v1255 = vadd.f32 %v1153, %v1223
      %v1256 = vadd.f32 %v1154, %v1224
      %v1257 = vadd.f32 %v1155, %v1225
      %v1258 = vadd.f32 %v1156, %v1226
      %v1259 = vadd.f32 %v1157, %v1227
      %v1260 = vadd.f32 %v1158, %v1228
      %v1261 = vadd.f32 %v1159, %v1229
      %v1262 = vadd.f32 %v1160, %v1230
      %v1263 = vadd.f32 %v1161, %v1231
      %v1264 = vadd.f32 %v1162, %v1232
      %v1265 = vadd.f32 %v1163, %v1233
      %v1266 = vadd.f32 %v1164, %v1234
      %v1267 = vadd.f32 %v1165, %v1235
      %v1268 = vadd.f32 %v1166, %v1236
      %v1269 = vadd.f32 %v1167, %v1237
      %v1270 = vadd.f32 %v1168, %v1238
      %v1271 = vadd.f32 %v1169, %v1239
      %v1272 = vadd.f32 %v1170, %v1240
      %v1273 = vadd.f32 %v1171, %v1241
      %v1274 = vadd.f32 %v1172, %v1242
      %v1275 = vadd.f32 %v1173, %v1243
      %v1276 = vadd.f32 %v1174, %v1244
      %v1277 = vadd.f32 %v1175, %v1245
      %v1278 = vadd.f32 %v1176, %v1246
      %v1279 = vadd.f32 %v1177, %v1247
      %v1280 = vadd.f32 %v1178, %v1248
      %v1281 = vadd.f32 %v1179, %v1249
      %v1282 = vadd.f32 %v1180, %v1250
      %v1283 = vadd.f32 %v1181, %v1251
      %v1284 = vadd.f32 %v1182, %v1252
      %v1285 = vld [vmem:[%s733 + $0x2] sm:$0xff]
      %v1286 = vld [vmem:[%s733 + $0xa] sm:$0xff]
      %v1287 = vld [vmem:[%s733 + $0x1a] sm:$0xff]
      %v1288 = vld [vmem:[%s733 + $0x22] sm:$0xff]
      %v1289 = vld [vmem:[%s733 + $0x32] sm:$0xff]
      %v1290 = vld [vmem:[%s733 + $0x3a] sm:$0xff]
      %v1291 = vld [vmem:[%s733 + $0x4a] sm:$0xff]
      %v1292 = vld [vmem:[%s733 + $0x52] sm:$0xff]
      %v1293 = vld [vmem:[%s733 + $0x62] sm:$0xff]
      %v1294 = vld [vmem:[%s733 + $0x6a] sm:$0xff]
      %v1295 = vld [vmem:[%s733 + $0x7a] sm:$0xff]
      %v1296 = vld [vmem:[%s733 + $0x82] sm:$0xff]
      %v1297 = vld [vmem:[%s733 + $0x92] sm:$0xff]
      %v1298 = vld [vmem:[%s733 + $0x9a] sm:$0xff]
      %v1299 = vld [vmem:[%s733 + $0xaa] sm:$0xff]
      %v1300 = vld [vmem:[%s733 + $0xb2] sm:$0xff]
      %v1301 = vld [vmem:[%s733 + $0xc2] sm:$0xff]
      %v1302 = vld [vmem:[%s733 + $0xca] sm:$0xff]
      %v1303 = vld [vmem:[%s733 + $0xda] sm:$0xff]
      %v1304 = vld [vmem:[%s733 + $0xe2] sm:$0xff]
      %v1305 = vld [vmem:[%s733 + $0xf2] sm:$0xff]
      %v1306 = vld [vmem:[%s733 + $0xfa] sm:$0xff]
      %v1307 = vld [vmem:[%s733 + $0x10a] sm:$0xff]
      %v1308 = vld [vmem:[%s733 + $0x112] sm:$0xff]
      %v1309 = vld [vmem:[%s733 + $0x122] sm:$0xff]
      %v1310 = vld [vmem:[%s733 + $0x12a] sm:$0xff]
      %v1311 = vld [vmem:[%s733 + $0x13a] sm:$0xff]
      %v1312 = vld [vmem:[%s733 + $0x142] sm:$0xff]
      %v1313 = vld [vmem:[%s733 + $0x152] sm:$0xff]
      %v1314 = vld [vmem:[%s733 + $0x15a] sm:$0xff]
      %v1315 = vld [vmem:[%s733 + $0x16a] sm:$0xff]
      %v1316 = vld [vmem:[%s733 + $0x172] sm:$0xff]
      %v1318 = vlaneseq
      %v1319 = vshrl.u32 %v1318, 7
      %v1320 = vsub.s32 0, %v1319
      %v1321 = vrot.slane %v771, %v1320
      %v1323 = vmul.f32 %v1285, %v1321
      %v1324 = vmul.f32 %v1286, %v1321
      %v1325 = vmul.f32 %v1287, %v1321
      %v1326 = vmul.f32 %v1288, %v1321
      %v1327 = vmul.f32 %v1289, %v1321
      %v1328 = vmul.f32 %v1290, %v1321
      %v1329 = vmul.f32 %v1291, %v1321
      %v1330 = vmul.f32 %v1292, %v1321
      %v1331 = vmul.f32 %v1293, %v1321
      %v1332 = vmul.f32 %v1294, %v1321
      %v1333 = vmul.f32 %v1295, %v1321
      %v1334 = vmul.f32 %v1296, %v1321
      %v1335 = vmul.f32 %v1297, %v1321
      %v1336 = vmul.f32 %v1298, %v1321
      %v1337 = vmul.f32 %v1299, %v1321
      %v1338 = vmul.f32 %v1300, %v1321
      %v1339 = vmul.f32 %v1301, %v1321
      %v1340 = vmul.f32 %v1302, %v1321
      %v1341 = vmul.f32 %v1303, %v1321
      %v1342 = vmul.f32 %v1304, %v1321
      %v1343 = vmul.f32 %v1305, %v1321
      %v1344 = vmul.f32 %v1306, %v1321
      %v1345 = vmul.f32 %v1307, %v1321
      %v1346 = vmul.f32 %v1308, %v1321
      %v1347 = vmul.f32 %v1309, %v1321
      %v1348 = vmul.f32 %v1310, %v1321
      %v1349 = vmul.f32 %v1311, %v1321
      %v1350 = vmul.f32 %v1312, %v1321
      %v1351 = vmul.f32 %v1313, %v1321
      %v1352 = vmul.f32 %v1314, %v1321
      %v1353 = vmul.f32 %v1315, %v1321
      %v1354 = vmul.f32 %v1316, %v1321
      %v1355 = vadd.f32 %v1253, %v1323
      %v1356 = vadd.f32 %v1254, %v1324
      %v1357 = vadd.f32 %v1255, %v1325
      %v1358 = vadd.f32 %v1256, %v1326
      %v1359 = vadd.f32 %v1257, %v1327
      %v1360 = vadd.f32 %v1258, %v1328
      %v1361 = vadd.f32 %v1259, %v1329
      %v1362 = vadd.f32 %v1260, %v1330
      %v1363 = vadd.f32 %v1261, %v1331
      %v1364 = vadd.f32 %v1262, %v1332
      %v1365 = vadd.f32 %v1263, %v1333
      %v1366 = vadd.f32 %v1264, %v1334
      %v1367 = vadd.f32 %v1265, %v1335
      %v1368 = vadd.f32 %v1266, %v1336
      %v1369 = vadd.f32 %v1267, %v1337
      %v1370 = vadd.f32 %v1268, %v1338
      %v1371 = vadd.f32 %v1269, %v1339
      %v1372 = vadd.f32 %v1270, %v1340
      %v1373 = vadd.f32 %v1271, %v1341
      %v1374 = vadd.f32 %v1272, %v1342
      %v1375 = vadd.f32 %v1273, %v1343
      %v1376 = vadd.f32 %v1274, %v1344
      %v1377 = vadd.f32 %v1275, %v1345
      %v1378 = vadd.f32 %v1276, %v1346
      %v1379 = vadd.f32 %v1277, %v1347
      %v1380 = vadd.f32 %v1278, %v1348
      %v1381 = vadd.f32 %v1279, %v1349
      %v1382 = vadd.f32 %v1280, %v1350
      %v1383 = vadd.f32 %v1281, %v1351
      %v1384 = vadd.f32 %v1282, %v1352
      %v1385 = vadd.f32 %v1283, %v1353
      %v1386 = vadd.f32 %v1284, %v1354
      %s1387 = scalar_lea.vmem [#allocation2], 48
      %v1388 = vld [vmem:[%s1387] sm:$0xff]
      %v1389 = vld [vmem:[%s1387 + $0x8] sm:$0xff]
      %v1390 = vld [vmem:[%s1387 + $0x18] sm:$0xff]
      %v1391 = vld [vmem:[%s1387 + $0x20] sm:$0xff]
      %v1392 = vld [vmem:[%s1387 + $0x30] sm:$0xff]
      %v1393 = vld [vmem:[%s1387 + $0x38] sm:$0xff]
      %v1394 = vld [vmem:[%s1387 + $0x48] sm:$0xff]
      %v1395 = vld [vmem:[%s1387 + $0x50] sm:$0xff]
      %v1396 = vld [vmem:[%s1387 + $0x60] sm:$0xff]
      %v1397 = vld [vmem:[%s1387 + $0x68] sm:$0xff]
      %v1398 = vld [vmem:[%s1387 + $0x78] sm:$0xff]
      %v1399 = vld [vmem:[%s1387 + $0x80] sm:$0xff]
      %v1400 = vld [vmem:[%s1387 + $0x90] sm:$0xff]
      %v1401 = vld [vmem:[%s1387 + $0x98] sm:$0xff]
      %v1402 = vld [vmem:[%s1387 + $0xa8] sm:$0xff]
      %v1403 = vld [vmem:[%s1387 + $0xb0] sm:$0xff]
      %v1404 = vld [vmem:[%s1387 + $0xc0] sm:$0xff]
      %v1405 = vld [vmem:[%s1387 + $0xc8] sm:$0xff]
      %v1406 = vld [vmem:[%s1387 + $0xd8] sm:$0xff]
      %v1407 = vld [vmem:[%s1387 + $0xe0] sm:$0xff]
      %v1408 = vld [vmem:[%s1387 + $0xf0] sm:$0xff]
      %v1409 = vld [vmem:[%s1387 + $0xf8] sm:$0xff]
      %v1410 = vld [vmem:[%s1387 + $0x108] sm:$0xff]
      %v1411 = vld [vmem:[%s1387 + $0x110] sm:$0xff]
      %v1412 = vld [vmem:[%s1387 + $0x120] sm:$0xff]
      %v1413 = vld [vmem:[%s1387 + $0x128] sm:$0xff]
      %v1414 = vld [vmem:[%s1387 + $0x138] sm:$0xff]
      %v1415 = vld [vmem:[%s1387 + $0x140] sm:$0xff]
      %v1416 = vld [vmem:[%s1387 + $0x150] sm:$0xff]
      %v1417 = vld [vmem:[%s1387 + $0x158] sm:$0xff]
      %v1418 = vld [vmem:[%s1387 + $0x168] sm:$0xff]
      %v1419 = vld [vmem:[%s1387 + $0x170] sm:$0xff]
      %v1421 = vlaneseq
      %v1422 = vshrl.u32 %v1421, 7
      %v1423 = vsub.s32 0, %v1422
      %v1424 = vrot.slane %v772, %v1423
      %v1426 = vmul.f32 %v1388, %v1424
      %v1427 = vmul.f32 %v1389, %v1424
      %v1428 = vmul.f32 %v1390, %v1424
      %v1429 = vmul.f32 %v1391, %v1424
      %v1430 = vmul.f32 %v1392, %v1424
      %v1431 = vmul.f32 %v1393, %v1424
      %v1432 = vmul.f32 %v1394, %v1424
      %v1433 = vmul.f32 %v1395, %v1424
      %v1434 = vmul.f32 %v1396, %v1424
      %v1435 = vmul.f32 %v1397, %v1424
      %v1436 = vmul.f32 %v1398, %v1424
      %v1437 = vmul.f32 %v1399, %v1424
      %v1438 = vmul.f32 %v1400, %v1424
      %v1439 = vmul.f32 %v1401, %v1424
      %v1440 = vmul.f32 %v1402, %v1424
      %v1441 = vmul.f32 %v1403, %v1424
      %v1442 = vmul.f32 %v1404, %v1424
      %v1443 = vmul.f32 %v1405, %v1424
      %v1444 = vmul.f32 %v1406, %v1424
      %v1445 = vmul.f32 %v1407, %v1424
      %v1446 = vmul.f32 %v1408, %v1424
      %v1447 = vmul.f32 %v1409, %v1424
      %v1448 = vmul.f32 %v1410, %v1424
      %v1449 = vmul.f32 %v1411, %v1424
      %v1450 = vmul.f32 %v1412, %v1424
      %v1451 = vmul.f32 %v1413, %v1424
      %v1452 = vmul.f32 %v1414, %v1424
      %v1453 = vmul.f32 %v1415, %v1424
      %v1454 = vmul.f32 %v1416, %v1424
      %v1455 = vmul.f32 %v1417, %v1424
      %v1456 = vmul.f32 %v1418, %v1424
      %v1457 = vmul.f32 %v1419, %v1424
      %v1458 = vadd.f32 %v1355, %v1426
      %v1459 = vadd.f32 %v1356, %v1427
      %v1460 = vadd.f32 %v1357, %v1428
      %v1461 = vadd.f32 %v1358, %v1429
      %v1462 = vadd.f32 %v1359, %v1430
      %v1463 = vadd.f32 %v1360, %v1431
      %v1464 = vadd.f32 %v1361, %v1432
      %v1465 = vadd.f32 %v1362, %v1433
      %v1466 = vadd.f32 %v1363, %v1434
      %v1467 = vadd.f32 %v1364, %v1435
      %v1468 = vadd.f32 %v1365, %v1436
      %v1469 = vadd.f32 %v1366, %v1437
      %v1470 = vadd.f32 %v1367, %v1438
      %v1471 = vadd.f32 %v1368, %v1439
      %v1472 = vadd.f32 %v1369, %v1440
      %v1473 = vadd.f32 %v1370, %v1441
      %v1474 = vadd.f32 %v1371, %v1442
      %v1475 = vadd.f32 %v1372, %v1443
      %v1476 = vadd.f32 %v1373, %v1444
      %v1477 = vadd.f32 %v1374, %v1445
      %v1478 = vadd.f32 %v1375, %v1446
      %v1479 = vadd.f32 %v1376, %v1447
      %v1480 = vadd.f32 %v1377, %v1448
      %v1481 = vadd.f32 %v1378, %v1449
      %v1482 = vadd.f32 %v1379, %v1450
      %v1483 = vadd.f32 %v1380, %v1451
      %v1484 = vadd.f32 %v1381, %v1452
      %v1485 = vadd.f32 %v1382, %v1453
      %v1486 = vadd.f32 %v1383, %v1454
      %v1487 = vadd.f32 %v1384, %v1455
      %v1488 = vadd.f32 %v1385, %v1456
      %v1489 = vadd.f32 %v1386, %v1457
      %v1490 = vld [vmem:[%s1387 + $0x1] sm:$0xff]
      %v1491 = vld [vmem:[%s1387 + $0x9] sm:$0xff]
      %v1492 = vld [vmem:[%s1387 + $0x19] sm:$0xff]
      %v1493 = vld [vmem:[%s1387 + $0x21] sm:$0xff]
      %v1494 = vld [vmem:[%s1387 + $0x31] sm:$0xff]
      %v1495 = vld [vmem:[%s1387 + $0x39] sm:$0xff]
      %v1496 = vld [vmem:[%s1387 + $0x49] sm:$0xff]
      %v1497 = vld [vmem:[%s1387 + $0x51] sm:$0xff]
      %v1498 = vld [vmem:[%s1387 + $0x61] sm:$0xff]
      %v1499 = vld [vmem:[%s1387 + $0x69] sm:$0xff]
      %v1500 = vld [vmem:[%s1387 + $0x79] sm:$0xff]
      %v1501 = vld [vmem:[%s1387 + $0x81] sm:$0xff]
      %v1502 = vld [vmem:[%s1387 + $0x91] sm:$0xff]
      %v1503 = vld [vmem:[%s1387 + $0x99] sm:$0xff]
      %v1504 = vld [vmem:[%s1387 + $0xa9] sm:$0xff]
      %v1505 = vld [vmem:[%s1387 + $0xb1] sm:$0xff]
      %v1506 = vld [vmem:[%s1387 + $0xc1] sm:$0xff]
      %v1507 = vld [vmem:[%s1387 + $0xc9] sm:$0xff]
      %v1508 = vld [vmem:[%s1387 + $0xd9] sm:$0xff]
      %v1509 = vld [vmem:[%s1387 + $0xe1] sm:$0xff]
      %v1510 = vld [vmem:[%s1387 + $0xf1] sm:$0xff]
      %v1511 = vld [vmem:[%s1387 + $0xf9] sm:$0xff]
      %v1512 = vld [vmem:[%s1387 + $0x109] sm:$0xff]
      %v1513 = vld [vmem:[%s1387 + $0x111] sm:$0xff]
      %v1514 = vld [vmem:[%s1387 + $0x121] sm:$0xff]
      %v1515 = vld [vmem:[%s1387 + $0x129] sm:$0xff]
      %v1516 = vld [vmem:[%s1387 + $0x139] sm:$0xff]
      %v1517 = vld [vmem:[%s1387 + $0x141] sm:$0xff]
      %v1518 = vld [vmem:[%s1387 + $0x151] sm:$0xff]
      %v1519 = vld [vmem:[%s1387 + $0x159] sm:$0xff]
      %v1520 = vld [vmem:[%s1387 + $0x169] sm:$0xff]
      %v1521 = vld [vmem:[%s1387 + $0x171] sm:$0xff]
      %v1523 = vlaneseq
      %v1524 = vshrl.u32 %v1523, 7
      %v1525 = vsub.s32 0, %v1524
      %v1526 = vrot.slane %v773, %v1525
      %v1528 = vmul.f32 %v1490, %v1526
      %v1529 = vmul.f32 %v1491, %v1526
      %v1530 = vmul.f32 %v1492, %v1526
      %v1531 = vmul.f32 %v1493, %v1526
      %v1532 = vmul.f32 %v1494, %v1526
      %v1533 = vmul.f32 %v1495, %v1526
      %v1534 = vmul.f32 %v1496, %v1526
      %v1535 = vmul.f32 %v1497, %v1526
      %v1536 = vmul.f32 %v1498, %v1526
      %v1537 = vmul.f32 %v1499, %v1526
      %v1538 = vmul.f32 %v1500, %v1526
      %v1539 = vmul.f32 %v1501, %v1526
      %v1540 = vmul.f32 %v1502, %v1526
      %v1541 = vmul.f32 %v1503, %v1526
      %v1542 = vmul.f32 %v1504, %v1526
      %v1543 = vmul.f32 %v1505, %v1526
      %v1544 = vmul.f32 %v1506, %v1526
      %v1545 = vmul.f32 %v1507, %v1526
      %v1546 = vmul.f32 %v1508, %v1526
      %v1547 = vmul.f32 %v1509, %v1526
      %v1548 = vmul.f32 %v1510, %v1526
      %v1549 = vmul.f32 %v1511, %v1526
      %v1550 = vmul.f32 %v1512, %v1526
      %v1551 = vmul.f32 %v1513, %v1526
      %v1552 = vmul.f32 %v1514, %v1526
      %v1553 = vmul.f32 %v1515, %v1526
      %v1554 = vmul.f32 %v1516, %v1526
      %v1555 = vmul.f32 %v1517, %v1526
      %v1556 = vmul.f32 %v1518, %v1526
      %v1557 = vmul.f32 %v1519, %v1526
      %v1558 = vmul.f32 %v1520, %v1526
      %v1559 = vmul.f32 %v1521, %v1526
      %v1560 = vadd.f32 %v1458, %v1528
      %v1561 = vadd.f32 %v1459, %v1529
      %v1562 = vadd.f32 %v1460, %v1530
      %v1563 = vadd.f32 %v1461, %v1531
      %v1564 = vadd.f32 %v1462, %v1532
      %v1565 = vadd.f32 %v1463, %v1533
      %v1566 = vadd.f32 %v1464, %v1534
      %v1567 = vadd.f32 %v1465, %v1535
      %v1568 = vadd.f32 %v1466, %v1536
      %v1569 = vadd.f32 %v1467, %v1537
      %v1570 = vadd.f32 %v1468, %v1538
      %v1571 = vadd.f32 %v1469, %v1539
      %v1572 = vadd.f32 %v1470, %v1540
      %v1573 = vadd.f32 %v1471, %v1541
      %v1574 = vadd.f32 %v1472, %v1542
      %v1575 = vadd.f32 %v1473, %v1543
      %v1576 = vadd.f32 %v1474, %v1544
      %v1577 = vadd.f32 %v1475, %v1545
      %v1578 = vadd.f32 %v1476, %v1546
      %v1579 = vadd.f32 %v1477, %v1547
      %v1580 = vadd.f32 %v1478, %v1548
      %v1581 = vadd.f32 %v1479, %v1549
      %v1582 = vadd.f32 %v1480, %v1550
      %v1583 = vadd.f32 %v1481, %v1551
      %v1584 = vadd.f32 %v1482, %v1552
      %v1585 = vadd.f32 %v1483, %v1553
      %v1586 = vadd.f32 %v1484, %v1554
      %v1587 = vadd.f32 %v1485, %v1555
      %v1588 = vadd.f32 %v1486, %v1556
      %v1589 = vadd.f32 %v1487, %v1557
      %v1590 = vadd.f32 %v1488, %v1558
      %v1591 = vadd.f32 %v1489, %v1559
      %v1592 = vld [vmem:[%s1387 + $0x2] sm:$0xff]
      %v1593 = vld [vmem:[%s1387 + $0xa] sm:$0xff]
      %v1594 = vld [vmem:[%s1387 + $0x1a] sm:$0xff]
      %v1595 = vld [vmem:[%s1387 + $0x22] sm:$0xff]
      %v1596 = vld [vmem:[%s1387 + $0x32] sm:$0xff]
      %v1597 = vld [vmem:[%s1387 + $0x3a] sm:$0xff]
      %v1598 = vld [vmem:[%s1387 + $0x4a] sm:$0xff]
      %v1599 = vld [vmem:[%s1387 + $0x52] sm:$0xff]
      %v1600 = vld [vmem:[%s1387 + $0x62] sm:$0xff]
      %v1601 = vld [vmem:[%s1387 + $0x6a] sm:$0xff]
      %v1602 = vld [vmem:[%s1387 + $0x7a] sm:$0xff]
      %v1603 = vld [vmem:[%s1387 + $0x82] sm:$0xff]
      %v1604 = vld [vmem:[%s1387 + $0x92] sm:$0xff]
      %v1605 = vld [vmem:[%s1387 + $0x9a] sm:$0xff]
      %v1606 = vld [vmem:[%s1387 + $0xaa] sm:$0xff]
      %v1607 = vld [vmem:[%s1387 + $0xb2] sm:$0xff]
      %v1608 = vld [vmem:[%s1387 + $0xc2] sm:$0xff]
      %v1609 = vld [vmem:[%s1387 + $0xca] sm:$0xff]
      %v1610 = vld [vmem:[%s1387 + $0xda] sm:$0xff]
      %v1611 = vld [vmem:[%s1387 + $0xe2] sm:$0xff]
      %v1612 = vld [vmem:[%s1387 + $0xf2] sm:$0xff]
      %v1613 = vld [vmem:[%s1387 + $0xfa] sm:$0xff]
      %v1614 = vld [vmem:[%s1387 + $0x10a] sm:$0xff]
      %v1615 = vld [vmem:[%s1387 + $0x112] sm:$0xff]
      %v1616 = vld [vmem:[%s1387 + $0x122] sm:$0xff]
      %v1617 = vld [vmem:[%s1387 + $0x12a] sm:$0xff]
      %v1618 = vld [vmem:[%s1387 + $0x13a] sm:$0xff]
      %v1619 = vld [vmem:[%s1387 + $0x142] sm:$0xff]
      %v1620 = vld [vmem:[%s1387 + $0x152] sm:$0xff]
      %v1621 = vld [vmem:[%s1387 + $0x15a] sm:$0xff]
      %v1622 = vld [vmem:[%s1387 + $0x16a] sm:$0xff]
      %v1623 = vld [vmem:[%s1387 + $0x172] sm:$0xff]
      %v1625 = vlaneseq
      %v1626 = vshrl.u32 %v1625, 7
      %v1627 = vsub.s32 0, %v1626
      %v1628 = vrot.slane %v774, %v1627
      %v1630 = vmul.f32 %v1592, %v1628
      %v1631 = vmul.f32 %v1593, %v1628
      %v1632 = vmul.f32 %v1594, %v1628
      %v1633 = vmul.f32 %v1595, %v1628
      %v1634 = vmul.f32 %v1596, %v1628
      %v1635 = vmul.f32 %v1597, %v1628
      %v1636 = vmul.f32 %v1598, %v1628
      %v1637 = vmul.f32 %v1599, %v1628
      %v1638 = vmul.f32 %v1600, %v1628
      %v1639 = vmul.f32 %v1601, %v1628
      %v1640 = vmul.f32 %v1602, %v1628
      %v1641 = vmul.f32 %v1603, %v1628
      %v1642 = vmul.f32 %v1604, %v1628
      %v1643 = vmul.f32 %v1605, %v1628
      %v1644 = vmul.f32 %v1606, %v1628
      %v1645 = vmul.f32 %v1607, %v1628
      %v1646 = vmul.f32 %v1608, %v1628
      %v1647 = vmul.f32 %v1609, %v1628
      %v1648 = vmul.f32 %v1610, %v1628
      %v1649 = vmul.f32 %v1611, %v1628
      %v1650 = vmul.f32 %v1612, %v1628
      %v1651 = vmul.f32 %v1613, %v1628
      %v1652 = vmul.f32 %v1614, %v1628
      %v1653 = vmul.f32 %v1615, %v1628
      %v1654 = vmul.f32 %v1616, %v1628
      %v1655 = vmul.f32 %v1617, %v1628
      %v1656 = vmul.f32 %v1618, %v1628
      %v1657 = vmul.f32 %v1619, %v1628
      %v1658 = vmul.f32 %v1620, %v1628
      %v1659 = vmul.f32 %v1621, %v1628
      %v1660 = vmul.f32 %v1622, %v1628
      %v1661 = vmul.f32 %v1623, %v1628
      %v1662 = vadd.f32 %v1560, %v1630
      %v1663 = vadd.f32 %v1561, %v1631
      %v1664 = vadd.f32 %v1562, %v1632
      %v1665 = vadd.f32 %v1563, %v1633
      %v1666 = vadd.f32 %v1564, %v1634
      %v1667 = vadd.f32 %v1565, %v1635
      %v1668 = vadd.f32 %v1566, %v1636
      %v1669 = vadd.f32 %v1567, %v1637
      %v1670 = vadd.f32 %v1568, %v1638
      %v1671 = vadd.f32 %v1569, %v1639
      %v1672 = vadd.f32 %v1570, %v1640
      %v1673 = vadd.f32 %v1571, %v1641
      %v1674 = vadd.f32 %v1572, %v1642
      %v1675 = vadd.f32 %v1573, %v1643
      %v1676 = vadd.f32 %v1574, %v1644
      %v1677 = vadd.f32 %v1575, %v1645
      %v1678 = vadd.f32 %v1576, %v1646
      %v1679 = vadd.f32 %v1577, %v1647
      %v1680 = vadd.f32 %v1578, %v1648
      %v1681 = vadd.f32 %v1579, %v1649
      %v1682 = vadd.f32 %v1580, %v1650
      %v1683 = vadd.f32 %v1581, %v1651
      %v1684 = vadd.f32 %v1582, %v1652
      %v1685 = vadd.f32 %v1583, %v1653
      %v1686 = vadd.f32 %v1584, %v1654
      %v1687 = vadd.f32 %v1585, %v1655
      %v1688 = vadd.f32 %v1586, %v1656
      %v1689 = vadd.f32 %v1587, %v1657
      %v1690 = vadd.f32 %v1588, %v1658
      %v1691 = vadd.f32 %v1589, %v1659
      %v1692 = vadd.f32 %v1590, %v1660
      %v1693 = vadd.f32 %v1591, %v1661
      %v1694 = vld [vmem:[%s4] sm:$0x1]
      %v1696 = vlaneseq
      %v1697 = vshrl.u32 %v1696, 7
      %v1698 = vsub.s32 0, %v1697
      %v1699 = vrot.slane %v1694, %v1698
      %v1701 = vadd.f32 %v1662, %v1699
      %v1702 = vadd.f32 %v1663, %v1699
      %v1703 = vadd.f32 %v1664, %v1699
      %v1704 = vadd.f32 %v1665, %v1699
      %v1705 = vadd.f32 %v1666, %v1699
      %v1706 = vadd.f32 %v1667, %v1699
      %v1707 = vadd.f32 %v1668, %v1699
      %v1708 = vadd.f32 %v1669, %v1699
      %v1709 = vadd.f32 %v1670, %v1699
      %v1710 = vadd.f32 %v1671, %v1699
      %v1711 = vadd.f32 %v1672, %v1699
      %v1712 = vadd.f32 %v1673, %v1699
      %v1713 = vadd.f32 %v1674, %v1699
      %v1714 = vadd.f32 %v1675, %v1699
      %v1715 = vadd.f32 %v1676, %v1699
      %v1716 = vadd.f32 %v1677, %v1699
      %v1717 = vadd.f32 %v1678, %v1699
      %v1718 = vadd.f32 %v1679, %v1699
      %v1719 = vadd.f32 %v1680, %v1699
      %v1720 = vadd.f32 %v1681, %v1699
      %v1721 = vadd.f32 %v1682, %v1699
      %v1722 = vadd.f32 %v1683, %v1699
      %v1723 = vadd.f32 %v1684, %v1699
      %v1724 = vadd.f32 %v1685, %v1699
      %v1725 = vadd.f32 %v1686, %v1699
      %v1726 = vadd.f32 %v1687, %v1699
      %v1727 = vadd.f32 %v1688, %v1699
      %v1728 = vadd.f32 %v1689, %v1699
      %v1729 = vadd.f32 %v1690, %v1699
      %v1730 = vadd.f32 %v1691, %v1699
      %v1731 = vadd.f32 %v1692, %v1699
      %v1732 = vadd.f32 %v1693, %v1699
      %v1733 = vld [vmem:[%s5] sm:$0xff]
      %v1734 = vld [vmem:[%s6] sm:$0x1]
      %v1736 = vlaneseq
      %v1737 = vshrl.u32 %v1736, 7
      %v1738 = vsub.s32 0, %v1737
      %v1739 = vrot.slane %v1734, %v1738
      %v1742 = vsel %vm279, %v1701, 0
      %v1745 = vsel %vm279, %v1702, 0
      %v1748 = vsel %vm279, %v1703, 0
      %v1751 = vsel %vm279, %v1704, 0
      %v1754 = vsel %vm279, %v1705, 0
      %v1757 = vsel %vm279, %v1706, 0
      %v1760 = vsel %vm279, %v1707, 0
      %v1763 = vsel %vm279, %v1708, 0
      %v1766 = vsel %vm279, %v1709, 0
      %v1769 = vsel %vm279, %v1710, 0
      %v1772 = vsel %vm279, %v1711, 0
      %v1775 = vsel %vm279, %v1712, 0
      %v1778 = vsel %vm279, %v1713, 0
      %v1781 = vsel %vm279, %v1714, 0
      %v1784 = vsel %vm279, %v1715, 0
      %v1787 = vsel %vm279, %v1716, 0
      %v1790 = vsel %vm279, %v1717, 0
      %v1793 = vsel %vm279, %v1718, 0
      %v1796 = vsel %vm279, %v1719, 0
      %v1799 = vsel %vm279, %v1720, 0
      %v1802 = vsel %vm279, %v1721, 0
      %v1805 = vsel %vm279, %v1722, 0
      %v1808 = vsel %vm279, %v1723, 0
      %v1811 = vsel %vm279, %v1724, 0
      %v1814 = vsel %vm279, %v1725, 0
      %v1817 = vsel %vm279, %v1726, 0
      %v1820 = vsel %vm279, %v1727, 0
      %v1823 = vsel %vm279, %v1728, 0
      %v1826 = vsel %vm279, %v1729, 0
      %v1829 = vsel %vm279, %v1730, 0
      %v1832 = vsel %vm279, %v1731, 0
      %v1835 = vsel %vm279, %v1732, 0
      %1837 = vmatprep.subr.mxu0 0.0
      %1838 = vmatpush1.msra.mxu0 %v1733
      %1839 = vmatprep.subr.mxu0 0.0
      %1840 = vmatpush1.msra.mxu0 0.0
      %1841 = vmatprep.subr.mxu0 0.0
      %1842 = vmatpush1.msra.mxu0 0.0
      %1843 = vmatprep.subr.mxu0 0.0
      %1844 = vmatpush1.msra.mxu0 0.0
      %1845 = vmatprep.subr.mxu0 0.0
      %1846 = vmatpush1.msra.mxu0 0.0
      %1847 = vmatprep.subr.mxu0 0.0
      %1848 = vmatpush1.msra.mxu0 0.0
      %1849 = vmatprep.subr.mxu0 0.0
      %1850 = vmatpush1.msra.mxu0 0.0
      %1851 = vmatprep.subr.mxu0 0.0
      %1852 = vmatpush1.msra.mxu0 0.0
      %1853 = vmatprep.subr.mxu0 0.0
      %1854 = vmatpush1.msra.mxu0 0.0
      %1855 = vmatprep.subr.mxu0 0.0
      %1856 = vmatpush1.msra.mxu0 0.0
      %1857 = vmatprep.subr.mxu0 0.0
      %1858 = vmatpush1.msra.mxu0 0.0
      %1859 = vmatprep.subr.mxu0 0.0
      %1860 = vmatpush1.msra.mxu0 0.0
      %1861 = vmatprep.subr.mxu0 0.0
      %1862 = vmatpush1.msra.mxu0 0.0
      %1863 = vmatprep.subr.mxu0 0.0
      %1864 = vmatpush1.msra.mxu0 0.0
      %1865 = vmatprep.subr.mxu0 0.0
      %1866 = vmatpush1.msra.mxu0 0.0
      %1867 = vmatprep.subr.mxu0 0.0
      %1868 = vmatpush1.msra.mxu0 0.0
      %1869 = vmatprep.subr.mxu0 0.0
      %1870 = vmatpush1.msra.mxu0 0.0
      %1871 = vmatprep.subr.mxu0 0.0
      %1872 = vmatpush1.msra.mxu0 0.0
      %1873 = vmatprep.subr.mxu0 0.0
      %1874 = vmatpush1.msra.mxu0 0.0
      %1875 = vmatprep.subr.mxu0 0.0
      %1876 = vmatpush1.msra.mxu0 0.0
      %1877 = vmatprep.subr.mxu0 0.0
      %1878 = vmatpush1.msra.mxu0 0.0
      %1879 = vmatprep.subr.mxu0 0.0
      %1880 = vmatpush1.msra.mxu0 0.0
      %1881 = vmatprep.subr.mxu0 0.0
      %1882 = vmatpush1.msra.mxu0 0.0
      %1883 = vmatprep.subr.mxu0 0.0
      %1884 = vmatpush1.msra.mxu0 0.0
      %1885 = vmatprep.subr.mxu0 0.0
      %1886 = vmatpush1.msra.mxu0 0.0
      %1887 = vmatprep.subr.mxu0 0.0
      %1888 = vmatpush1.msra.mxu0 0.0
      %1889 = vmatprep.subr.mxu0 0.0
      %1890 = vmatpush1.msra.mxu0 0.0
      %1891 = vmatprep.subr.mxu0 0.0
      %1892 = vmatpush1.msra.mxu0 0.0
      %1893 = vmatprep.subr.mxu0 0.0
      %1894 = vmatpush1.msra.mxu0 0.0
      %1895 = vmatprep.subr.mxu0 0.0
      %1896 = vmatpush1.msra.mxu0 0.0
      %1897 = vmatprep.subr.mxu0 0.0
      %1898 = vmatpush1.msra.mxu0 0.0
      %1899 = vmatprep.subr.mxu0 0.0
      %1900 = vmatpush1.msra.mxu0 0.0
      %1901 = vmatprep.mubr.f32.mxu0 0.0
      %1902 = vmatmul.mubr.f32.gmra.mrb[0].mxu0 %v1742
      %v1903 = vpop.f32.mrb[0].mxu0
      %v1904 = vadd.f32 %v1739, %v1903
      %v1905 = vpop.f32.mrb[0].mxu0
      %1906 = vmatprep.mubr.f32.mxu0 0.0
      %1907 = vmatmul.mubr.f32.gmra.mrb[0].mxu0 %v1745
      %v1908 = vpop.f32.mrb[0].mxu0
      %v1909 = vadd.f32 %v1739, %v1908
      %v1910 = vpop.f32.mrb[0].mxu0
      %1911 = vmatprep.mubr.f32.mxu0 0.0
      %1912 = vmatmul.mubr.f32.gmra.mrb[0].mxu0 %v1748
      %v1913 = vpop.f32.mrb[0].mxu0
      %v1914 = vadd.f32 %v1739, %v1913
      %v1915 = vpop.f32.mrb[0].mxu0
      %1916 = vmatprep.mubr.f32.mxu0 0.0
      %1917 = vmatmul.mubr.f32.gmra.mrb[0].mxu0 %v1751
      %v1918 = vpop.f32.mrb[0].mxu0
      %v1919 = vadd.f32 %v1739, %v1918
      %v1920 = vpop.f32.mrb[0].mxu0
      %1921 = vmatprep.mubr.f32.mxu0 0.0
      %1922 = vmatmul.mubr.f32.gmra.mrb[0].mxu0 %v1754
      %v1923 = vpop.f32.mrb[0].mxu0
      %v1924 = vadd.f32 %v1739, %v1923
      %v1925 = vpop.f32.mrb[0].mxu0
      %1926 = vmatprep.mubr.f32.mxu0 0.0
      %1927 = vmatmul.mubr.f32.gmra.mrb[0].mxu0 %v1757
      %v1928 = vpop.f32.mrb[0].mxu0
      %v1929 = vadd.f32 %v1739, %v1928
      %v1930 = vpop.f32.mrb[0].mxu0
      %1931 = vmatprep.mubr.f32.mxu0 0.0
      %1932 = vmatmul.mubr.f32.gmra.mrb[0].mxu0 %v1760
      %v1933 = vpop.f32.mrb[0].mxu0
      %v1934 = vadd.f32 %v1739, %v1933
      %v1935 = vpop.f32.mrb[0].mxu0
      %1936 = vmatprep.mubr.f32.mxu0 0.0
      %1937 = vmatmul.mubr.f32.gmra.mrb[0].mxu0 %v1763
      %v1938 = vpop.f32.mrb[0].mxu0
      %v1939 = vadd.f32 %v1739, %v1938
      %v1940 = vpop.f32.mrb[0].mxu0
      %1941 = vmatprep.mubr.f32.mxu0 0.0
      %1942 = vmatmul.mubr.f32.gmra.mrb[0].mxu0 %v1766
      %v1943 = vpop.f32.mrb[0].mxu0
      %v1944 = vadd.f32 %v1739, %v1943
      %v1945 = vpop.f32.mrb[0].mxu0
      %1946 = vmatprep.mubr.f32.mxu0 0.0
      %1947 = vmatmul.mubr.f32.gmra.mrb[0].mxu0 %v1769
      %v1948 = vpop.f32.mrb[0].mxu0
      %v1949 = vadd.f32 %v1739, %v1948
      %v1950 = vpop.f32.mrb[0].mxu0
      %1951 = vmatprep.mubr.f32.mxu0 0.0
      %1952 = vmatmul.mubr.f32.gmra.mrb[0].mxu0 %v1772
      %v1953 = vpop.f32.mrb[0].mxu0
      %v1954 = vadd.f32 %v1739, %v1953
      %v1955 = vpop.f32.mrb[0].mxu0
      %1956 = vmatprep.mubr.f32.mxu0 0.0
      %1957 = vmatmul.mubr.f32.gmra.mrb[0].mxu0 %v1775
      %v1958 = vpop.f32.mrb[0].mxu0
      %v1959 = vadd.f32 %v1739, %v1958
      %v1960 = vpop.f32.mrb[0].mxu0
      %1961 = vmatprep.mubr.f32.mxu0 0.0
      %1962 = vmatmul.mubr.f32.gmra.mrb[0].mxu0 %v1778
      %v1963 = vpop.f32.mrb[0].mxu0
      %v1964 = vadd.f32 %v1739, %v1963
      %v1965 = vpop.f32.mrb[0].mxu0
      %1966 = vmatprep.mubr.f32.mxu0 0.0
      %1967 = vmatmul.mubr.f32.gmra.mrb[0].mxu0 %v1781
      %v1968 = vpop.f32.mrb[0].mxu0
      %v1969 = vadd.f32 %v1739, %v1968
      %v1970 = vpop.f32.mrb[0].mxu0
      %1971 = vmatprep.mubr.f32.mxu0 0.0
      %1972 = vmatmul.mubr.f32.gmra.mrb[0].mxu0 %v1784
      %v1973 = vpop.f32.mrb[0].mxu0
      %v1974 = vadd.f32 %v1739, %v1973
      %v1975 = vpop.f32.mrb[0].mxu0
      %1976 = vmatprep.mubr.f32.mxu0 0.0
      %1977 = vmatmul.mubr.f32.gmra.mrb[0].mxu0 %v1787
      %v1978 = vpop.f32.mrb[0].mxu0
      %v1979 = vadd.f32 %v1739, %v1978
      %v1980 = vpop.f32.mrb[0].mxu0
      %1981 = vmatprep.mubr.f32.mxu0 0.0
      %1982 = vmatmul.mubr.f32.gmra.mrb[0].mxu0 %v1790
      %v1983 = vpop.f32.mrb[0].mxu0
      %v1984 = vadd.f32 %v1739, %v1983
      %v1985 = vpop.f32.mrb[0].mxu0
      %1986 = vmatprep.mubr.f32.mxu0 0.0
      %1987 = vmatmul.mubr.f32.gmra.mrb[0].mxu0 %v1793
      %v1988 = vpop.f32.mrb[0].mxu0
      %v1989 = vadd.f32 %v1739, %v1988
      %v1990 = vpop.f32.mrb[0].mxu0
      %1991 = vmatprep.mubr.f32.mxu0 0.0
      %1992 = vmatmul.mubr.f32.gmra.mrb[0].mxu0 %v1796
      %v1993 = vpop.f32.mrb[0].mxu0
      %v1994 = vadd.f32 %v1739, %v1993
      %v1995 = vpop.f32.mrb[0].mxu0
      %1996 = vmatprep.mubr.f32.mxu0 0.0
      %1997 = vmatmul.mubr.f32.gmra.mrb[0].mxu0 %v1799
      %v1998 = vpop.f32.mrb[0].mxu0
      %v1999 = vadd.f32 %v1739, %v1998
      %v2000 = vpop.f32.mrb[0].mxu0
      %2001 = vmatprep.mubr.f32.mxu0 0.0
      %2002 = vmatmul.mubr.f32.gmra.mrb[0].mxu0 %v1802
      %v2003 = vpop.f32.mrb[0].mxu0
      %v2004 = vadd.f32 %v1739, %v2003
      %v2005 = vpop.f32.mrb[0].mxu0
      %2006 = vmatprep.mubr.f32.mxu0 0.0
      %2007 = vmatmul.mubr.f32.gmra.mrb[0].mxu0 %v1805
      %v2008 = vpop.f32.mrb[0].mxu0
      %v2009 = vadd.f32 %v1739, %v2008
      %v2010 = vpop.f32.mrb[0].mxu0
      %2011 = vmatprep.mubr.f32.mxu0 0.0
      %2012 = vmatmul.mubr.f32.gmra.mrb[0].mxu0 %v1808
      %v2013 = vpop.f32.mrb[0].mxu0
      %v2014 = vadd.f32 %v1739, %v2013
      %v2015 = vpop.f32.mrb[0].mxu0
      %2016 = vmatprep.mubr.f32.mxu0 0.0
      %2017 = vmatmul.mubr.f32.gmra.mrb[0].mxu0 %v1811
      %v2018 = vpop.f32.mrb[0].mxu0
      %v2019 = vadd.f32 %v1739, %v2018
      %v2020 = vpop.f32.mrb[0].mxu0
      %2021 = vmatprep.mubr.f32.mxu0 0.0
      %2022 = vmatmul.mubr.f32.gmra.mrb[0].mxu0 %v1814
      %v2023 = vpop.f32.mrb[0].mxu0
      %v2024 = vadd.f32 %v1739, %v2023
      %v2025 = vpop.f32.mrb[0].mxu0
      %2026 = vmatprep.mubr.f32.mxu0 0.0
      %2027 = vmatmul.mubr.f32.gmra.mrb[0].mxu0 %v1817
      %v2028 = vpop.f32.mrb[0].mxu0
      %v2029 = vadd.f32 %v1739, %v2028
      %v2030 = vpop.f32.mrb[0].mxu0
      %2031 = vmatprep.mubr.f32.mxu0 0.0
      %2032 = vmatmul.mubr.f32.gmra.mrb[0].mxu0 %v1820
      %v2033 = vpop.f32.mrb[0].mxu0
      %v2034 = vadd.f32 %v1739, %v2033
      %v2035 = vpop.f32.mrb[0].mxu0
      %2036 = vmatprep.mubr.f32.mxu0 0.0
      %2037 = vmatmul.mubr.f32.gmra.mrb[0].mxu0 %v1823
      %v2038 = vpop.f32.mrb[0].mxu0
      %v2039 = vadd.f32 %v1739, %v2038
      %v2040 = vpop.f32.mrb[0].mxu0
      %2041 = vmatprep.mubr.f32.mxu0 0.0
      %2042 = vmatmul.mubr.f32.gmra.mrb[0].mxu0 %v1826
      %v2043 = vpop.f32.mrb[0].mxu0
      %v2044 = vadd.f32 %v1739, %v2043
      %v2045 = vpop.f32.mrb[0].mxu0
      %2046 = vmatprep.mubr.f32.mxu0 0.0
      %2047 = vmatmul.mubr.f32.gmra.mrb[0].mxu0 %v1829
      %v2048 = vpop.f32.mrb[0].mxu0
      %v2049 = vadd.f32 %v1739, %v2048
      %v2050 = vpop.f32.mrb[0].mxu0
      %2051 = vmatprep.mubr.f32.mxu0 0.0
      %2052 = vmatmul.mubr.f32.gmra.mrb[0].mxu0 %v1832
      %v2053 = vpop.f32.mrb[0].mxu0
      %v2054 = vadd.f32 %v1739, %v2053
      %v2055 = vpop.f32.mrb[0].mxu0
      %2056 = vmatprep.mubr.f32.mxu0 0.0
      %2057 = vmatmul.mubr.f32.gmra.mrb[0].mxu0 %v1835
      %v2058 = vpop.f32.mrb[0].mxu0
      %v2059 = vadd.f32 %v1739, %v2058
      %v2060 = vpop.f32.mrb[0].mxu0
      %2061 = vdwg.mxu0
      %v2062 = vmax.f32 %v1904, 0.0
      %v2063 = vmax.f32 %v1909, 0.0
      %v2064 = vmax.f32 %v1914, 0.0
      %v2065 = vmax.f32 %v1919, 0.0
      %v2066 = vmax.f32 %v1924, 0.0
      %v2067 = vmax.f32 %v1929, 0.0
      %v2068 = vmax.f32 %v1934, 0.0
      %v2069 = vmax.f32 %v1939, 0.0
      %v2070 = vmax.f32 %v1944, 0.0
      %v2071 = vmax.f32 %v1949, 0.0
      %v2072 = vmax.f32 %v1954, 0.0
      %v2073 = vmax.f32 %v1959, 0.0
      %v2074 = vmax.f32 %v1964, 0.0
      %v2075 = vmax.f32 %v1969, 0.0
      %v2076 = vmax.f32 %v1974, 0.0
      %v2077 = vmax.f32 %v1979, 0.0
      %v2078 = vmax.f32 %v1984, 0.0
      %v2079 = vmax.f32 %v1989, 0.0
      %v2080 = vmax.f32 %v1994, 0.0
      %v2081 = vmax.f32 %v1999, 0.0
      %v2082 = vmax.f32 %v2004, 0.0
      %v2083 = vmax.f32 %v2009, 0.0
      %v2084 = vmax.f32 %v2014, 0.0
      %v2085 = vmax.f32 %v2019, 0.0
      %v2086 = vmax.f32 %v2024, 0.0
      %v2087 = vmax.f32 %v2029, 0.0
      %v2088 = vmax.f32 %v2034, 0.0
      %v2089 = vmax.f32 %v2039, 0.0
      %v2090 = vmax.f32 %v2044, 0.0
      %v2091 = vmax.f32 %v2049, 0.0
      %v2092 = vmax.f32 %v2054, 0.0
      %v2093 = vmax.f32 %v2059, 0.0
      %2094 = vst.msk [vmem:[%s278] sm:$0xff] %vm375, %v2062
      %2095 = vst.msk [vmem:[%s278 + $0x8] sm:$0xff] %vm375, %v2063
      %2096 = vst.msk [vmem:[%s278 + $0x10] sm:$0xff] %vm375, %v2064
      %2097 = vst.msk [vmem:[%s278 + $0x18] sm:$0xff] %vm375, %v2065
      %2098 = vst.msk [vmem:[%s278 + $0x20] sm:$0xff] %vm375, %v2066
      %2099 = vst.msk [vmem:[%s278 + $0x28] sm:$0xff] %vm375, %v2067
      %2100 = vst.msk [vmem:[%s278 + $0x30] sm:$0xff] %vm375, %v2068
      %2101 = vst.msk [vmem:[%s278 + $0x38] sm:$0xff] %vm375, %v2069
      %2102 = vst.msk [vmem:[%s278 + $0x40] sm:$0xff] %vm375, %v2070
      %2103 = vst.msk [vmem:[%s278 + $0x48] sm:$0xff] %vm375, %v2071
      %2104 = vst.msk [vmem:[%s278 + $0x50] sm:$0xff] %vm375, %v2072
      %2105 = vst.msk [vmem:[%s278 + $0x58] sm:$0xff] %vm375, %v2073
      %2106 = vst.msk [vmem:[%s278 + $0x60] sm:$0xff] %vm375, %v2074
      %2107 = vst.msk [vmem:[%s278 + $0x68] sm:$0xff] %vm375, %v2075
      %2108 = vst.msk [vmem:[%s278 + $0x70] sm:$0xff] %vm375, %v2076
      %2109 = vst.msk [vmem:[%s278 + $0x78] sm:$0xff] %vm375, %v2077
      %2110 = vst.msk [vmem:[%s278 + $0x80] sm:$0xff] %vm375, %v2078
      %2111 = vst.msk [vmem:[%s278 + $0x88] sm:$0xff] %vm375, %v2079
      %2112 = vst.msk [vmem:[%s278 + $0x90] sm:$0xff] %vm375, %v2080
      %2113 = vst.msk [vmem:[%s278 + $0x98] sm:$0xff] %vm375, %v2081
      %2114 = vst.msk [vmem:[%s278 + $0xa0] sm:$0xff] %vm375, %v2082
      %2115 = vst.msk [vmem:[%s278 + $0xa8] sm:$0xff] %vm375, %v2083
      %2116 = vst.msk [vmem:[%s278 + $0xb0] sm:$0xff] %vm375, %v2084
      %2117 = vst.msk [vmem:[%s278 + $0xb8] sm:$0xff] %vm375, %v2085
      %2118 = vst.msk [vmem:[%s278 + $0xc0] sm:$0xff] %vm375, %v2086
      %2119 = vst.msk [vmem:[%s278 + $0xc8] sm:$0xff] %vm375, %v2087
      %2120 = vst.msk [vmem:[%s278 + $0xd0] sm:$0xff] %vm375, %v2088
      %2121 = vst.msk [vmem:[%s278 + $0xd8] sm:$0xff] %vm375, %v2089
      %2122 = vst.msk [vmem:[%s278 + $0xe0] sm:$0xff] %vm375, %v2090
      %2123 = vst.msk [vmem:[%s278 + $0xe8] sm:$0xff] %vm375, %v2091
      %2124 = vst.msk [vmem:[%s278 + $0xf0] sm:$0xff] %vm375, %v2092
      %2125 = vst.msk [vmem:[%s278 + $0xf8] sm:$0xff] %vm375, %v2093
      %p2126 = scmp.lt.s32.totalorder %s18, 1
      %s2127 = scalar_select %p2126, %s18, 1
      %s2128 = smul.addr %s2127, 32
      %s2129 = smul.addr %s2128, 8
      %s2130 = scalar_lea.vmem %s7, %s2129
      // Predicated region
      $region49: #{shuffle_v2_block.1} parent=47 // pred_check
        %p2131 = pneg %p188
      $region50: #{shuffle_v2_block.1} parent=47 // pred_check_branch
        %2133 = sbr.rel (%p2131) target = $region52
      $region51: #{shuffle_v2_block.1} parent=47 // pred_region
        _
      $region52: #{shuffle_v2_block.1} parent=47 // pred_fallthru
        _
    $region48: #{shuffle_v2_block.1} parent=5 // pred_fallthru
      _
    %p2134 = scmp.le.s32.totalorder 2, %s13
    // Predicated region
    $region53: #{shuffle_v2_block.1} parent=5 // pred_check
      %p2135 = pneg %p2134
    $region54: #{shuffle_v2_block.1} parent=5 // pred_check_branch
      %2137 = sbr.rel (%p2135) target = $region56
    $region55: #{shuffle_v2_block.1} parent=5 // pred_region
      %s2138 = ssub.s32 %s13, 2
      // Predicated region
      $region57: #{shuffle_v2_block.1} parent=55 // pred_check
        %p2139 = pneg %p194
      $region58: #{shuffle_v2_block.1} parent=55 // pred_check_branch
        %2141 = sbr.rel (%p2139) target = $region60
      $region59: #{shuffle_v2_block.1} parent=55 // pred_region
        %p2142 = scmp.lt.s32.totalorder %s19, 1
        %s2143 = scalar_select %p2142, %s19, 1
        %s2144 = smul.addr %s2143, 32
        %s2145 = smul.addr %s2144, 8
        %s2146 = scalar_lea.vmem %s7, %s2145
      $region60: #{shuffle_v2_block.1} parent=55 // pred_fallthru
        _
    $region56: #{shuffle_v2_block.1} parent=5 // pred_fallthru
      _
  $region6: #{shuffle_v2_block.1} parent=0 // loop_footer
    %s17 = sadd.s32 1, %s13
  $region7: #{shuffle_v2_block.1} parent=0 // loop_footer_branch
    %12 = sbr.rel target = $region3
  $region8: #{shuffle_v2_block.1} parent=0 // loop_exit
    _

</llo_original>
